<compile_context>
chip_gen: v6e
topology: v6e:2x2x1
jax: 0.10.0
libtpu: 0.0.40
codegen_flags: <defaults>
</compile_context>

<pallas_src>
import functools

import jax
import jax.numpy as jnp
from jax.experimental import pallas as pl
from jax.experimental.pallas import tpu as pltpu

_INV_SQRT2 = 0.7071067811865475244


def _layer_kernel(x_ref, ln1w_ref, ln1b_ref, wqkv_ref, wout_ref, bout_ref,
                  ln2w_ref, ln2b_ref, wff1_ref, bff1_ref, wff2_ref, bff2_ref,
                  o_ref, attn_scratch, *, dim, heads):
    d = dim // heads
    # NOTE: the reference PyTorch Attention uses dim ** -0.5 (full model dim),
    # not head_dim ** -0.5 -- we match the module as specified.
    scale = dim ** (-0.5)
    eps = 1e-5
    bf16 = jnp.bfloat16
    f32 = jnp.float32

    x = x_ref[0]  # (n, dim) f32

    # ---------------- PreNorm (LayerNorm) for attention (f32, VPU/XLU) ----------------
    mu = jnp.mean(x, axis=-1, keepdims=True)
    var = jnp.mean(jnp.square(x - mu), axis=-1, keepdims=True)
    y = (x - mu) * jax.lax.rsqrt(var + eps) * ln1w_ref[0] + ln1b_ref[0]

    # ---------------- Attention ----------------
    # Single (n, dim) @ (dim, 3*dim) bf16 MXU matmul (K = dim), f32 accumulation.
    qkv = jnp.dot(y.astype(bf16), wqkv_ref[...], preferred_element_type=f32)
    # Fold the softmax scale into q once; this matches dots * scale exactly up to
    # bf16 rounding of q (accounted for in the tolerance).
    q16 = (qkv[:, 0 * dim:1 * dim] * scale).astype(bf16)
    k16 = qkv[:, 1 * dim:2 * dim].astype(bf16)
    v16 = qkv[:, 2 * dim:3 * dim].astype(bf16)

    # Per-head scores / attn @ v (K = head_dim here is inherent to attention).
    # Each head's context lands in its lane slice of one (n, dim) VMEM scratch so the
    # output projection below is ONE full-K matmul instead of `heads` small-K matmuls.
    for h in range(heads):
        sl = slice(h * d, (h + 1) * d)
        dots = jax.lax.dot_general(
            q16[:, sl], k16[:, sl],
            dimension_numbers=(((1,), (1,)), ((), ())),
            preferred_element_type=f32)                        # (n, n) f32
        dots = dots - jnp.max(dots, axis=-1, keepdims=True)    # stable softmax
        e = jnp.exp(dots)                                       # EUP
        inv_l = pl.reciprocal(jnp.sum(e, axis=-1, keepdims=True), approx=True)
        attn = e * inv_l
        attn_scratch[:, sl] = jnp.dot(attn.astype(bf16), v16[:, sl],
                                      preferred_element_type=f32)

    attn_out = jnp.dot(attn_scratch[...].astype(bf16), wout_ref[...],
                       preferred_element_type=f32) + bout_ref[0]
    x = x + attn_out  # residual

    # ---------------- PreNorm (LayerNorm) for FeedForward ----------------
    mu2 = jnp.mean(x, axis=-1, keepdims=True)
    var2 = jnp.mean(jnp.square(x - mu2), axis=-1, keepdims=True)
    y2 = (x - mu2) * jax.lax.rsqrt(var2 + eps) * ln2w_ref[0] + ln2b_ref[0]

    # ---------------- FeedForward (dropout == identity in eval) ----------------
    h1 = jnp.dot(y2.astype(bf16), wff1_ref[...], preferred_element_type=f32) + bff1_ref[0]
    g = 0.5 * h1 * (1.0 + jax.lax.erf(h1 * _INV_SQRT2))   # exact erf GELU (nn.GELU())
    h2 = jnp.dot(g.astype(bf16), wff2_ref[...], preferred_element_type=f32) + bff2_ref[0]

    o_ref[0] = x + h2  # residual


def _vmem_limit_bytes(n, dim, mlp_dim, params):
    """Explicit scoped-VMEM budget from the actual block footprint (+2x margin)."""
    weight_bytes = sum(int(v.size) * v.dtype.itemsize for v in params.values())
    io_bytes = 2 * 2 * n * dim * 4               # x & out tiles, double-buffered f32
    inter_bytes = 4 * (3 * n * dim               # qkv (f32)
                       + 4 * n * dim             # q/k/v bf16 + attn scratch + attn_out
                       + 2 * n * n               # scores + exp
                       + 2 * n * mlp_dim)        # h1 + gelu
    est = weight_bytes + io_bytes + inter_bytes
    # clamp: at least 16 MiB of headroom, never above v7x's 64 MiB physical VMEM
    return int(min(64 * 2 ** 20, max(16 * 2 ** 20, 2 * est)))


def transformer_layer(x, p, *, heads):
    b, n, dim = x.shape
    mlp_dim = p["wff1"].shape[1]
    kernel = functools.partial(_layer_kernel, dim=dim, heads=heads)

    # Weights / biases never change across the batch grid: single-buffer them so
    # they are fetched once and don't pay 2x VMEM for a second pipeline buffer.
    def const_spec(shape):
        return pl.BlockSpec(shape, lambda i: (0,) * len(shape),
                            pipeline_mode=pl.Buffered(1))

    in_specs = [
        pl.BlockSpec((1, n, dim), lambda i: (i, 0, 0)),   # x (one batch element / step)
        const_spec((1, dim)),            # ln1 weight
        const_spec((1, dim)),            # ln1 bias
        const_spec((dim, 3 * dim)),      # W_qkv  (bf16)
        const_spec((dim, dim)),          # W_out  (bf16)
        const_spec((1, dim)),            # b_out
        const_spec((1, dim)),            # ln2 weight
        const_spec((1, dim)),            # ln2 bias
        const_spec((dim, mlp_dim)),      # W_ff1  (bf16)
        const_spec((1, mlp_dim)),        # b_ff1
        const_spec((mlp_dim, dim)),      # W_ff2  (bf16)
        const_spec((1, dim)),            # b_ff2
    ]

    return pl.pallas_call(
        kernel,
        out_shape=jax.ShapeDtypeStruct((b, n, dim), jnp.float32),
        grid_spec=pltpu.PrefetchScalarGridSpec(
            num_scalar_prefetch=0,
            grid=(b,),
            in_specs=in_specs,
            out_specs=pl.BlockSpec((1, n, dim), lambda i: (i, 0, 0)),
            scratch_shapes=[pltpu.VMEM((n, dim), jnp.float32)],   # per-head context
        ),
        compiler_params=pltpu.CompilerParams(
            dimension_semantics=("parallel",),
            vmem_limit_bytes=_vmem_limit_bytes(n, dim, mlp_dim, p),
        ),
    )(x, p["ln1w"], p["ln1b"], p["wqkv"], p["wout"], p["bout"],
      p["ln2w"], p["ln2b"], p["wff1"], p["bff1"], p["wff2"], p["bff2"])


def transformer_forward(x, layers, *, heads):
    for p in layers:
        x = transformer_layer(x, p, heads=heads)
    return x


# -------- pure-JAX reference (mirrors the PyTorch module + the kernel's precision) --------
def _ref_layer(x, p, heads):
    b, n, dim = x.shape
    d = dim // heads
    scale = dim ** (-0.5)
    bf16 = jnp.bfloat16
    f32 = jnp.float32

    def ln(z, w, bb):
        mu = z.mean(-1, keepdims=True)
        var = ((z - mu) ** 2).mean(-1, keepdims=True)
        return (z - mu) * jax.lax.rsqrt(var + 1e-5) * w + bb

    y = ln(x, p["ln1w"][0], p["ln1b"][0])
    qkv = jnp.dot(y.astype(bf16), p["wqkv"], preferred_element_type=f32)  # (b, n, 3*dim)
    q = (qkv[..., 0 * dim:1 * dim] * scale).astype(bf16)
    k = qkv[..., 1 * dim:2 * dim].astype(bf16)
    v = qkv[..., 2 * dim:3 * dim].astype(bf16)
    q = q.reshape(b, n, heads, d).transpose(0, 2, 1, 3)                   # (b, h, n, d)
    k = k.reshape(b, n, heads, d).transpose(0, 2, 1, 3)
    v = v.reshape(b, n, heads, d).transpose(0, 2, 1, 3)
    dots = jnp.einsum("bhid,bhjd->bhij", q, k, preferred_element_type=f32)
    attn = jax.nn.softmax(dots, axis=-1)
    out = jnp.einsum("bhij,bhjd->bhid", attn.astype(bf16), v, preferred_element_type=f32)
    out = out.transpose(0, 2, 1, 3).reshape(b, n, dim)
    x = x + jnp.dot(out.astype(bf16), p["wout"], preferred_element_type=f32) + p["bout"][0]

    y2 = ln(x, p["ln2w"][0], p["ln2b"][0])
    h1 = jnp.dot(y2.astype(bf16), p["wff1"], preferred_element_type=f32) + p["bff1"][0]
    g = 0.5 * h1 * (1.0 + jax.lax.erf(h1 * _INV_SQRT2))
    return x + jnp.dot(g.astype(bf16), p["wff2"], preferred_element_type=f32) + p["bff2"][0]


def _ref_forward(x, layers, heads):
    for p in layers:
        x = _ref_layer(x, p, heads)
    return x


def _init_layer_params(key, dim, mlp_dim):
    ks = jax.random.split(key, 7)

    def uni(k, shape, fan_in):
        bound = 1.0 / (fan_in ** 0.5)
        return jax.random.uniform(k, shape, jnp.float32, -bound, bound)

    return dict(
        ln1w=jnp.ones((1, dim), jnp.float32),
        ln1b=jnp.zeros((1, dim), jnp.float32),
        # MXU-facing weights stored in bf16 (halves weight DMA + VMEM); LN/bias stay f32.
        wqkv=uni(ks[0], (dim, 3 * dim), dim).astype(jnp.bfloat16),   # Linear(dim, 3*dim, bias=False)
        wout=uni(ks[1], (dim, dim), dim).astype(jnp.bfloat16),       # Linear(dim, dim)
        bout=uni(ks[2], (1, dim), dim),
        ln2w=jnp.ones((1, dim), jnp.float32),
        ln2b=jnp.zeros((1, dim), jnp.float32),
        wff1=uni(ks[3], (dim, mlp_dim), dim).astype(jnp.bfloat16),   # Linear(dim, mlp_dim)
        bff1=uni(ks[4], (1, mlp_dim), dim),
        wff2=uni(ks[5], (mlp_dim, dim), mlp_dim).astype(jnp.bfloat16),  # Linear(mlp_dim, dim)
        bff2=uni(ks[6], (1, dim), mlp_dim),
    )


if __name__ == "__main__":
    batch, seq, dim, heads, mlp_dim, depth = 2, 8, 32, 8, 64, 2

    key = jax.random.PRNGKey(0)
    key, xk = jax.random.split(key)
    x = jax.random.normal(xk, (batch, seq, dim), dtype=jnp.float32)

    layers = []
    for _ in range(depth):
        key, lk = jax.random.split(key)
        layers.append(_init_layer_params(lk, dim, mlp_dim))

    out = transformer_forward(x, layers, heads=heads)
    out = jax.block_until_ready(out)

    ref = _ref_forward(x, layers, heads)
    assert out.shape == (batch, seq, dim)
    # tolerance accounts for the approx (EUP) softmax reciprocal in the kernel
    assert jnp.allclose(out, ref, atol=2e-2, rtol=2e-2), "mismatch vs pure-JAX reference"

    print("KERNEL_OK")
</pallas_src>

<mosaic_0001>
module attributes {stable_mosaic.version = 11 : i64} {
  func.func @_layer_kernel(%arg0: i32, %arg1: memref<1x8x32xf32, #tpu.memory_space<vmem>>, %arg2: memref<1x32xf32, #tpu.memory_space<vmem>>, %arg3: memref<1x32xf32, #tpu.memory_space<vmem>>, %arg4: memref<32x96xbf16, #tpu.memory_space<vmem>>, %arg5: memref<32x32xbf16, #tpu.memory_space<vmem>>, %arg6: memref<1x32xf32, #tpu.memory_space<vmem>>, %arg7: memref<1x32xf32, #tpu.memory_space<vmem>>, %arg8: memref<1x32xf32, #tpu.memory_space<vmem>>, %arg9: memref<32x64xbf16, #tpu.memory_space<vmem>>, %arg10: memref<1x64xf32, #tpu.memory_space<vmem>>, %arg11: memref<64x32xbf16, #tpu.memory_space<vmem>>, %arg12: memref<1x32xf32, #tpu.memory_space<vmem>>, %arg13: memref<1x8x32xf32, #tpu.memory_space<vmem>>, %arg14: memref<8x32xf32, #tpu.memory_space<vmem>>) attributes {dimension_semantics = [#tpu.dimension_semantics<parallel>], iteration_bounds = array<i64: 2>, scalar_prefetch = 0 : i64, scratch_operands = 1 : i64, tpu.core_type = #tpu.core_type<tc>, window_params = [{transform_indices = @transform_0, window_bounds = array<i64: 1, 8, 32>}, {pipeline_mode = #tpu.pipeline_mode<synchronous>, transform_indices = @transform_1, window_bounds = array<i64: 1, 32>}, {pipeline_mode = #tpu.pipeline_mode<synchronous>, transform_indices = @transform_2, window_bounds = array<i64: 1, 32>}, {pipeline_mode = #tpu.pipeline_mode<synchronous>, transform_indices = @transform_3, window_bounds = array<i64: 32, 96>}, {pipeline_mode = #tpu.pipeline_mode<synchronous>, transform_indices = @transform_4, window_bounds = array<i64: 32, 32>}, {pipeline_mode = #tpu.pipeline_mode<synchronous>, transform_indices = @transform_5, window_bounds = array<i64: 1, 32>}, {pipeline_mode = #tpu.pipeline_mode<synchronous>, transform_indices = @transform_6, window_bounds = array<i64: 1, 32>}, {pipeline_mode = #tpu.pipeline_mode<synchronous>, transform_indices = @transform_7, window_bounds = array<i64: 1, 32>}, {pipeline_mode = #tpu.pipeline_mode<synchronous>, transform_indices = @transform_8, window_bounds = array<i64: 32, 64>}, {pipeline_mode = #tpu.pipeline_mode<synchronous>, transform_indices = @transform_9, window_bounds = array<i64: 1, 64>}, {pipeline_mode = #tpu.pipeline_mode<synchronous>, transform_indices = @transform_10, window_bounds = array<i64: 64, 32>}, {pipeline_mode = #tpu.pipeline_mode<synchronous>, transform_indices = @transform_11, window_bounds = array<i64: 1, 32>}, {transform_indices = @transform_12, window_bounds = array<i64: 1, 8, 32>}]} {
    %c0 = arith.constant 0 : index
    %c0_0 = arith.constant 0 : index
    %c0_1 = arith.constant 0 : index
    %0 = vector.load %arg1[%c0, %c0_0, %c0_1] : memref<1x8x32xf32, #tpu.memory_space<vmem>>, vector<1x8x32xf32>
    %1 = vector.shape_cast %0 : vector<1x8x32xf32> to vector<8x32xf32>
    %cst = arith.constant dense<0.000000e+00> : vector<8xf32>
    %2 = vector.multi_reduction <add>, %1, %cst [1] : vector<8x32xf32> to vector<8xf32>
    %3 = vector.shape_cast %2 : vector<8xf32> to vector<8x1xf32>
    %cst_2 = arith.constant 3.200000e+01 : f32
    %4 = vector.broadcast %cst_2 : f32 to vector<8x1xf32>
    %5 = arith.divf %3, %4 : vector<8x1xf32>
    %6 = vector.broadcast %5 : vector<8x1xf32> to vector<8x32xf32>
    %7 = arith.subf %1, %6 : vector<8x32xf32>
    %8 = arith.mulf %7, %7 : vector<8x32xf32>
    %cst_3 = arith.constant dense<0.000000e+00> : vector<8xf32>
    %9 = vector.multi_reduction <add>, %8, %cst_3 [1] : vector<8x32xf32> to vector<8xf32>
    %10 = vector.shape_cast %9 : vector<8xf32> to vector<8x1xf32>
    %cst_4 = arith.constant 3.200000e+01 : f32
    %11 = vector.broadcast %cst_4 : f32 to vector<8x1xf32>
    %12 = arith.divf %10, %11 : vector<8x1xf32>
    %13 = vector.broadcast %5 : vector<8x1xf32> to vector<8x32xf32>
    %14 = arith.subf %1, %13 : vector<8x32xf32>
    %cst_5 = arith.constant 9.99999974E-6 : f32
    %15 = vector.broadcast %cst_5 : f32 to vector<8x1xf32>
    %16 = arith.addf %12, %15 : vector<8x1xf32>
    %17 = math.rsqrt %16 : vector<8x1xf32>
    %18 = vector.broadcast %17 : vector<8x1xf32> to vector<8x32xf32>
    %19 = arith.mulf %14, %18 : vector<8x32xf32>
    %c0_6 = arith.constant 0 : index
    %c0_7 = arith.constant 0 : index
    %20 = vector.load %arg2[%c0_6, %c0_7] : memref<1x32xf32, #tpu.memory_space<vmem>>, vector<1x32xf32>
    %21 = vector.shape_cast %20 : vector<1x32xf32> to vector<32xf32>
    %22 = vector.shape_cast %21 : vector<32xf32> to vector<1x32xf32>
    %23 = vector.broadcast %22 : vector<1x32xf32> to vector<8x32xf32>
    %24 = arith.mulf %19, %23 : vector<8x32xf32>
    %c0_8 = arith.constant 0 : index
    %c0_9 = arith.constant 0 : index
    %25 = vector.load %arg3[%c0_8, %c0_9] : memref<1x32xf32, #tpu.memory_space<vmem>>, vector<1x32xf32>
    %26 = vector.shape_cast %25 : vector<1x32xf32> to vector<32xf32>
    %27 = vector.shape_cast %26 : vector<32xf32> to vector<1x32xf32>
    %28 = vector.broadcast %27 : vector<1x32xf32> to vector<8x32xf32>
    %29 = arith.addf %24, %28 : vector<8x32xf32>
    %30 = arith.truncf %29 : vector<8x32xf32> to vector<8x32xbf16>
    %c0_10 = arith.constant 0 : index
    %c0_11 = arith.constant 0 : index
    %31 = vector.load %arg4[%c0_10, %c0_11] : memref<32x96xbf16, #tpu.memory_space<vmem>>, vector<32x96xbf16>
    %cst_12 = arith.constant dense<0.000000e+00> : vector<8x96xf32>
    %32 = tpu.matmul %30, %31, %cst_12 {dimension_numbers = #tpu.dot_dimension_numbers<[1], [0], [0], [1], [0, 0, 1, 1], [], []>} : vector<8x32xbf16>, vector<32x96xbf16>, vector<8x96xf32> -> vector<8x96xf32>
    %33 = vector.extract_strided_slice %32 {offsets = [0, 0], sizes = [8, 32], strides = [1, 1]} : vector<8x96xf32> to vector<8x32xf32>
    %cst_13 = arith.constant 0.176776692 : f32
    %34 = vector.broadcast %cst_13 : f32 to vector<8x32xf32>
    %35 = arith.mulf %33, %34 : vector<8x32xf32>
    %36 = arith.truncf %35 : vector<8x32xf32> to vector<8x32xbf16>
    %37 = vector.extract_strided_slice %32 {offsets = [0, 32], sizes = [8, 32], strides = [1, 1]} : vector<8x96xf32> to vector<8x32xf32>
    %38 = arith.truncf %37 : vector<8x32xf32> to vector<8x32xbf16>
    %39 = vector.extract_strided_slice %32 {offsets = [0, 64], sizes = [8, 32], strides = [1, 1]} : vector<8x96xf32> to vector<8x32xf32>
    %40 = arith.truncf %39 : vector<8x32xf32> to vector<8x32xbf16>
    %41 = vector.extract_strided_slice %36 {offsets = [0, 0], sizes = [8, 4], strides = [1, 1]} : vector<8x32xbf16> to vector<8x4xbf16>
    %42 = vector.extract_strided_slice %38 {offsets = [0, 0], sizes = [8, 4], strides = [1, 1]} : vector<8x32xbf16> to vector<8x4xbf16>
    %cst_14 = arith.constant dense<0.000000e+00> : vector<8x8xf32>
    %43 = tpu.matmul %41, %42, %cst_14 {dimension_numbers = #tpu.dot_dimension_numbers<[1], [1], [0], [0], [0, 0, 1, 0], [], []>} : vector<8x4xbf16>, vector<8x4xbf16>, vector<8x8xf32> -> vector<8x8xf32>
    %cst_15 = arith.constant dense<0xFF800000> : vector<8xf32>
    %44 = vector.multi_reduction <maximumf>, %43, %cst_15 [1] : vector<8x8xf32> to vector<8xf32>
    %45 = vector.shape_cast %44 : vector<8xf32> to vector<8x1xf32>
    %46 = vector.broadcast %45 : vector<8x1xf32> to vector<8x8xf32>
    %47 = arith.subf %43, %46 : vector<8x8xf32>
    %48 = math.exp %47 : vector<8x8xf32>
    %cst_16 = arith.constant dense<0.000000e+00> : vector<8xf32>
    %49 = vector.multi_reduction <add>, %48, %cst_16 [1] : vector<8x8xf32> to vector<8xf32>
    %50 = vector.shape_cast %49 : vector<8xf32> to vector<8x1xf32>
    %51 = tpu.reciprocal %50 {approx = true} : vector<8x1xf32> -> vector<8x1xf32>
    %52 = vector.broadcast %51 : vector<8x1xf32> to vector<8x8xf32>
    %53 = arith.mulf %48, %52 : vector<8x8xf32>
    %54 = arith.truncf %53 : vector<8x8xf32> to vector<8x8xbf16>
    %55 = vector.extract_strided_slice %40 {offsets = [0, 0], sizes = [8, 4], strides = [1, 1]} : vector<8x32xbf16> to vector<8x4xbf16>
    %cst_17 = arith.constant dense<0.000000e+00> : vector<8x4xf32>
    %56 = tpu.matmul %54, %55, %cst_17 {dimension_numbers = #tpu.dot_dimension_numbers<[1], [0], [0], [1], [0, 0, 1, 1], [], []>} : vector<8x8xbf16>, vector<8x4xbf16>, vector<8x4xf32> -> vector<8x4xf32>
    %c0_18 = arith.constant 0 : index
    %c0_19 = arith.constant 0 : index
    %57 = vector.load %arg14[%c0_18, %c0_19] : memref<8x32xf32, #tpu.memory_space<vmem>>, vector<8x4xf32>
    tpu.vector_store %arg14[%c0_18, %c0_19], %56 {strides = array<i32>} : memref<8x32xf32, #tpu.memory_space<vmem>>, vector<8x4xf32>,
    %58 = vector.extract_strided_slice %36 {offsets = [0, 4], sizes = [8, 4], strides = [1, 1]} : vector<8x32xbf16> to vector<8x4xbf16>
    %59 = vector.extract_strided_slice %38 {offsets = [0, 4], sizes = [8, 4], strides = [1, 1]} : vector<8x32xbf16> to vector<8x4xbf16>
    %cst_20 = arith.constant dense<0.000000e+00> : vector<8x8xf32>
    %60 = tpu.matmul %58, %59, %cst_20 {dimension_numbers = #tpu.dot_dimension_numbers<[1], [1], [0], [0], [0, 0, 1, 0], [], []>} : vector<8x4xbf16>, vector<8x4xbf16>, vector<8x8xf32> -> vector<8x8xf32>
    %cst_21 = arith.constant dense<0xFF800000> : vector<8xf32>
    %61 = vector.multi_reduction <maximumf>, %60, %cst_21 [1] : vector<8x8xf32> to vector<8xf32>
    %62 = vector.shape_cast %61 : vector<8xf32> to vector<8x1xf32>
    %63 = vector.broadcast %62 : vector<8x1xf32> to vector<8x8xf32>
    %64 = arith.subf %60, %63 : vector<8x8xf32>
    %65 = math.exp %64 : vector<8x8xf32>
    %cst_22 = arith.constant dense<0.000000e+00> : vector<8xf32>
    %66 = vector.multi_reduction <add>, %65, %cst_22 [1] : vector<8x8xf32> to vector<8xf32>
    %67 = vector.shape_cast %66 : vector<8xf32> to vector<8x1xf32>
    %68 = tpu.reciprocal %67 {approx = true} : vector<8x1xf32> -> vector<8x1xf32>
    %69 = vector.broadcast %68 : vector<8x1xf32> to vector<8x8xf32>
    %70 = arith.mulf %65, %69 : vector<8x8xf32>
    %71 = arith.truncf %70 : vector<8x8xf32> to vector<8x8xbf16>
    %72 = vector.extract_strided_slice %40 {offsets = [0, 4], sizes = [8, 4], strides = [1, 1]} : vector<8x32xbf16> to vector<8x4xbf16>
    %cst_23 = arith.constant dense<0.000000e+00> : vector<8x4xf32>
    %73 = tpu.matmul %71, %72, %cst_23 {dimension_numbers = #tpu.dot_dimension_numbers<[1], [0], [0], [1], [0, 0, 1, 1], [], []>} : vector<8x8xbf16>, vector<8x4xbf16>, vector<8x4xf32> -> vector<8x4xf32>
    %c0_24 = arith.constant 0 : index
    %c4 = arith.constant 4 : index
    %74 = vector.load %arg14[%c0_24, %c4] : memref<8x32xf32, #tpu.memory_space<vmem>>, vector<8x4xf32>
    tpu.vector_store %arg14[%c0_24, %c4], %73 {strides = array<i32>} : memref<8x32xf32, #tpu.memory_space<vmem>>, vector<8x4xf32>,
    %75 = vector.extract_strided_slice %36 {offsets = [0, 8], sizes = [8, 4], strides = [1, 1]} : vector<8x32xbf16> to vector<8x4xbf16>
    %76 = vector.extract_strided_slice %38 {offsets = [0, 8], sizes = [8, 4], strides = [1, 1]} : vector<8x32xbf16> to vector<8x4xbf16>
    %cst_25 = arith.constant dense<0.000000e+00> : vector<8x8xf32>
    %77 = tpu.matmul %75, %76, %cst_25 {dimension_numbers = #tpu.dot_dimension_numbers<[1], [1], [0], [0], [0, 0, 1, 0], [], []>} : vector<8x4xbf16>, vector<8x4xbf16>, vector<8x8xf32> -> vector<8x8xf32>
    %cst_26 = arith.constant dense<0xFF800000> : vector<8xf32>
    %78 = vector.multi_reduction <maximumf>, %77, %cst_26 [1] : vector<8x8xf32> to vector<8xf32>
    %79 = vector.shape_cast %78 : vector<8xf32> to vector<8x1xf32>
    %80 = vector.broadcast %79 : vector<8x1xf32> to vector<8x8xf32>
    %81 = arith.subf %77, %80 : vector<8x8xf32>
    %82 = math.exp %81 : vector<8x8xf32>
    %cst_27 = arith.constant dense<0.000000e+00> : vector<8xf32>
    %83 = vector.multi_reduction <add>, %82, %cst_27 [1] : vector<8x8xf32> to vector<8xf32>
    %84 = vector.shape_cast %83 : vector<8xf32> to vector<8x1xf32>
    %85 = tpu.reciprocal %84 {approx = true} : vector<8x1xf32> -> vector<8x1xf32>
    %86 = vector.broadcast %85 : vector<8x1xf32> to vector<8x8xf32>
    %87 = arith.mulf %82, %86 : vector<8x8xf32>
    %88 = arith.truncf %87 : vector<8x8xf32> to vector<8x8xbf16>
    %89 = vector.extract_strided_slice %40 {offsets = [0, 8], sizes = [8, 4], strides = [1, 1]} : vector<8x32xbf16> to vector<8x4xbf16>
    %cst_28 = arith.constant dense<0.000000e+00> : vector<8x4xf32>
    %90 = tpu.matmul %88, %89, %cst_28 {dimension_numbers = #tpu.dot_dimension_numbers<[1], [0], [0], [1], [0, 0, 1, 1], [], []>} : vector<8x8xbf16>, vector<8x4xbf16>, vector<8x4xf32> -> vector<8x4xf32>
    %c0_29 = arith.constant 0 : index
    %c8 = arith.constant 8 : index
    %91 = vector.load %arg14[%c0_29, %c8] : memref<8x32xf32, #tpu.memory_space<vmem>>, vector<8x4xf32>
    tpu.vector_store %arg14[%c0_29, %c8], %90 {strides = array<i32>} : memref<8x32xf32, #tpu.memory_space<vmem>>, vector<8x4xf32>,
    %92 = vector.extract_strided_slice %36 {offsets = [0, 12], sizes = [8, 4], strides = [1, 1]} : vector<8x32xbf16> to vector<8x4xbf16>
    %93 = vector.extract_strided_slice %38 {offsets = [0, 12], sizes = [8, 4], strides = [1, 1]} : vector<8x32xbf16> to vector<8x4xbf16>
    %cst_30 = arith.constant dense<0.000000e+00> : vector<8x8xf32>
    %94 = tpu.matmul %92, %93, %cst_30 {dimension_numbers = #tpu.dot_dimension_numbers<[1], [1], [0], [0], [0, 0, 1, 0], [], []>} : vector<8x4xbf16>, vector<8x4xbf16>, vector<8x8xf32> -> vector<8x8xf32>
    %cst_31 = arith.constant dense<0xFF800000> : vector<8xf32>
    %95 = vector.multi_reduction <maximumf>, %94, %cst_31 [1] : vector<8x8xf32> to vector<8xf32>
    %96 = vector.shape_cast %95 : vector<8xf32> to vector<8x1xf32>
    %97 = vector.broadcast %96 : vector<8x1xf32> to vector<8x8xf32>
    %98 = arith.subf %94, %97 : vector<8x8xf32>
    %99 = math.exp %98 : vector<8x8xf32>
    %cst_32 = arith.constant dense<0.000000e+00> : vector<8xf32>
    %100 = vector.multi_reduction <add>, %99, %cst_32 [1] : vector<8x8xf32> to vector<8xf32>
    %101 = vector.shape_cast %100 : vector<8xf32> to vector<8x1xf32>
    %102 = tpu.reciprocal %101 {approx = true} : vector<8x1xf32> -> vector<8x1xf32>
    %103 = vector.broadcast %102 : vector<8x1xf32> to vector<8x8xf32>
    %104 = arith.mulf %99, %103 : vector<8x8xf32>
    %105 = arith.truncf %104 : vector<8x8xf32> to vector<8x8xbf16>
    %106 = vector.extract_strided_slice %40 {offsets = [0, 12], sizes = [8, 4], strides = [1, 1]} : vector<8x32xbf16> to vector<8x4xbf16>
    %cst_33 = arith.constant dense<0.000000e+00> : vector<8x4xf32>
    %107 = tpu.matmul %105, %106, %cst_33 {dimension_numbers = #tpu.dot_dimension_numbers<[1], [0], [0], [1], [0, 0, 1, 1], [], []>} : vector<8x8xbf16>, vector<8x4xbf16>, vector<8x4xf32> -> vector<8x4xf32>
    %c0_34 = arith.constant 0 : index
    %c12 = arith.constant 12 : index
    %108 = vector.load %arg14[%c0_34, %c12] : memref<8x32xf32, #tpu.memory_space<vmem>>, vector<8x4xf32>
    tpu.vector_store %arg14[%c0_34, %c12], %107 {strides = array<i32>} : memref<8x32xf32, #tpu.memory_space<vmem>>, vector<8x4xf32>,
    %109 = vector.extract_strided_slice %36 {offsets = [0, 16], sizes = [8, 4], strides = [1, 1]} : vector<8x32xbf16> to vector<8x4xbf16>
    %110 = vector.extract_strided_slice %38 {offsets = [0, 16], sizes = [8, 4], strides = [1, 1]} : vector<8x32xbf16> to vector<8x4xbf16>
    %cst_35 = arith.constant dense<0.000000e+00> : vector<8x8xf32>
    %111 = tpu.matmul %109, %110, %cst_35 {dimension_numbers = #tpu.dot_dimension_numbers<[1], [1], [0], [0], [0, 0, 1, 0], [], []>} : vector<8x4xbf16>, vector<8x4xbf16>, vector<8x8xf32> -> vector<8x8xf32>
    %cst_36 = arith.constant dense<0xFF800000> : vector<8xf32>
    %112 = vector.multi_reduction <maximumf>, %111, %cst_36 [1] : vector<8x8xf32> to vector<8xf32>
    %113 = vector.shape_cast %112 : vector<8xf32> to vector<8x1xf32>
    %114 = vector.broadcast %113 : vector<8x1xf32> to vector<8x8xf32>
    %115 = arith.subf %111, %114 : vector<8x8xf32>
    %116 = math.exp %115 : vector<8x8xf32>
    %cst_37 = arith.constant dense<0.000000e+00> : vector<8xf32>
    %117 = vector.multi_reduction <add>, %116, %cst_37 [1] : vector<8x8xf32> to vector<8xf32>
    %118 = vector.shape_cast %117 : vector<8xf32> to vector<8x1xf32>
    %119 = tpu.reciprocal %118 {approx = true} : vector<8x1xf32> -> vector<8x1xf32>
    %120 = vector.broadcast %119 : vector<8x1xf32> to vector<8x8xf32>
    %121 = arith.mulf %116, %120 : vector<8x8xf32>
    %122 = arith.truncf %121 : vector<8x8xf32> to vector<8x8xbf16>
    %123 = vector.extract_strided_slice %40 {offsets = [0, 16], sizes = [8, 4], strides = [1, 1]} : vector<8x32xbf16> to vector<8x4xbf16>
    %cst_38 = arith.constant dense<0.000000e+00> : vector<8x4xf32>
    %124 = tpu.matmul %122, %123, %cst_38 {dimension_numbers = #tpu.dot_dimension_numbers<[1], [0], [0], [1], [0, 0, 1, 1], [], []>} : vector<8x8xbf16>, vector<8x4xbf16>, vector<8x4xf32> -> vector<8x4xf32>
    %c0_39 = arith.constant 0 : index
    %c16 = arith.constant 16 : index
    %125 = vector.load %arg14[%c0_39, %c16] : memref<8x32xf32, #tpu.memory_space<vmem>>, vector<8x4xf32>
    tpu.vector_store %arg14[%c0_39, %c16], %124 {strides = array<i32>} : memref<8x32xf32, #tpu.memory_space<vmem>>, vector<8x4xf32>,
    %126 = vector.extract_strided_slice %36 {offsets = [0, 20], sizes = [8, 4], strides = [1, 1]} : vector<8x32xbf16> to vector<8x4xbf16>
    %127 = vector.extract_strided_slice %38 {offsets = [0, 20], sizes = [8, 4], strides = [1, 1]} : vector<8x32xbf16> to vector<8x4xbf16>
    %cst_40 = arith.constant dense<0.000000e+00> : vector<8x8xf32>
    %128 = tpu.matmul %126, %127, %cst_40 {dimension_numbers = #tpu.dot_dimension_numbers<[1], [1], [0], [0], [0, 0, 1, 0], [], []>} : vector<8x4xbf16>, vector<8x4xbf16>, vector<8x8xf32> -> vector<8x8xf32>
    %cst_41 = arith.constant dense<0xFF800000> : vector<8xf32>
    %129 = vector.multi_reduction <maximumf>, %128, %cst_41 [1] : vector<8x8xf32> to vector<8xf32>
    %130 = vector.shape_cast %129 : vector<8xf32> to vector<8x1xf32>
    %131 = vector.broadcast %130 : vector<8x1xf32> to vector<8x8xf32>
    %132 = arith.subf %128, %131 : vector<8x8xf32>
    %133 = math.exp %132 : vector<8x8xf32>
    %cst_42 = arith.constant dense<0.000000e+00> : vector<8xf32>
    %134 = vector.multi_reduction <add>, %133, %cst_42 [1] : vector<8x8xf32> to vector<8xf32>
    %135 = vector.shape_cast %134 : vector<8xf32> to vector<8x1xf32>
    %136 = tpu.reciprocal %135 {approx = true} : vector<8x1xf32> -> vector<8x1xf32>
    %137 = vector.broadcast %136 : vector<8x1xf32> to vector<8x8xf32>
    %138 = arith.mulf %133, %137 : vector<8x8xf32>
    %139 = arith.truncf %138 : vector<8x8xf32> to vector<8x8xbf16>
    %140 = vector.extract_strided_slice %40 {offsets = [0, 20], sizes = [8, 4], strides = [1, 1]} : vector<8x32xbf16> to vector<8x4xbf16>
    %cst_43 = arith.constant dense<0.000000e+00> : vector<8x4xf32>
    %141 = tpu.matmul %139, %140, %cst_43 {dimension_numbers = #tpu.dot_dimension_numbers<[1], [0], [0], [1], [0, 0, 1, 1], [], []>} : vector<8x8xbf16>, vector<8x4xbf16>, vector<8x4xf32> -> vector<8x4xf32>
    %c0_44 = arith.constant 0 : index
    %c20 = arith.constant 20 : index
    %142 = vector.load %arg14[%c0_44, %c20] : memref<8x32xf32, #tpu.memory_space<vmem>>, vector<8x4xf32>
    tpu.vector_store %arg14[%c0_44, %c20], %141 {strides = array<i32>} : memref<8x32xf32, #tpu.memory_space<vmem>>, vector<8x4xf32>,
    %143 = vector.extract_strided_slice %36 {offsets = [0, 24], sizes = [8, 4], strides = [1, 1]} : vector<8x32xbf16> to vector<8x4xbf16>
    %144 = vector.extract_strided_slice %38 {offsets = [0, 24], sizes = [8, 4], strides = [1, 1]} : vector<8x32xbf16> to vector<8x4xbf16>
    %cst_45 = arith.constant dense<0.000000e+00> : vector<8x8xf32>
    %145 = tpu.matmul %143, %144, %cst_45 {dimension_numbers = #tpu.dot_dimension_numbers<[1], [1], [0], [0], [0, 0, 1, 0], [], []>} : vector<8x4xbf16>, vector<8x4xbf16>, vector<8x8xf32> -> vector<8x8xf32>
    %cst_46 = arith.constant dense<0xFF800000> : vector<8xf32>
    %146 = vector.multi_reduction <maximumf>, %145, %cst_46 [1] : vector<8x8xf32> to vector<8xf32>
    %147 = vector.shape_cast %146 : vector<8xf32> to vector<8x1xf32>
    %148 = vector.broadcast %147 : vector<8x1xf32> to vector<8x8xf32>
    %149 = arith.subf %145, %148 : vector<8x8xf32>
    %150 = math.exp %149 : vector<8x8xf32>
    %cst_47 = arith.constant dense<0.000000e+00> : vector<8xf32>
    %151 = vector.multi_reduction <add>, %150, %cst_47 [1] : vector<8x8xf32> to vector<8xf32>
    %152 = vector.shape_cast %151 : vector<8xf32> to vector<8x1xf32>
    %153 = tpu.reciprocal %152 {approx = true} : vector<8x1xf32> -> vector<8x1xf32>
    %154 = vector.broadcast %153 : vector<8x1xf32> to vector<8x8xf32>
    %155 = arith.mulf %150, %154 : vector<8x8xf32>
    %156 = arith.truncf %155 : vector<8x8xf32> to vector<8x8xbf16>
    %157 = vector.extract_strided_slice %40 {offsets = [0, 24], sizes = [8, 4], strides = [1, 1]} : vector<8x32xbf16> to vector<8x4xbf16>
    %cst_48 = arith.constant dense<0.000000e+00> : vector<8x4xf32>
    %158 = tpu.matmul %156, %157, %cst_48 {dimension_numbers = #tpu.dot_dimension_numbers<[1], [0], [0], [1], [0, 0, 1, 1], [], []>} : vector<8x8xbf16>, vector<8x4xbf16>, vector<8x4xf32> -> vector<8x4xf32>
    %c0_49 = arith.constant 0 : index
    %c24 = arith.constant 24 : index
    %159 = vector.load %arg14[%c0_49, %c24] : memref<8x32xf32, #tpu.memory_space<vmem>>, vector<8x4xf32>
    tpu.vector_store %arg14[%c0_49, %c24], %158 {strides = array<i32>} : memref<8x32xf32, #tpu.memory_space<vmem>>, vector<8x4xf32>,
    %160 = vector.extract_strided_slice %36 {offsets = [0, 28], sizes = [8, 4], strides = [1, 1]} : vector<8x32xbf16> to vector<8x4xbf16>
    %161 = vector.extract_strided_slice %38 {offsets = [0, 28], sizes = [8, 4], strides = [1, 1]} : vector<8x32xbf16> to vector<8x4xbf16>
    %cst_50 = arith.constant dense<0.000000e+00> : vector<8x8xf32>
    %162 = tpu.matmul %160, %161, %cst_50 {dimension_numbers = #tpu.dot_dimension_numbers<[1], [1], [0], [0], [0, 0, 1, 0], [], []>} : vector<8x4xbf16>, vector<8x4xbf16>, vector<8x8xf32> -> vector<8x8xf32>
    %cst_51 = arith.constant dense<0xFF800000> : vector<8xf32>
    %163 = vector.multi_reduction <maximumf>, %162, %cst_51 [1] : vector<8x8xf32> to vector<8xf32>
    %164 = vector.shape_cast %163 : vector<8xf32> to vector<8x1xf32>
    %165 = vector.broadcast %164 : vector<8x1xf32> to vector<8x8xf32>
    %166 = arith.subf %162, %165 : vector<8x8xf32>
    %167 = math.exp %166 : vector<8x8xf32>
    %cst_52 = arith.constant dense<0.000000e+00> : vector<8xf32>
    %168 = vector.multi_reduction <add>, %167, %cst_52 [1] : vector<8x8xf32> to vector<8xf32>
    %169 = vector.shape_cast %168 : vector<8xf32> to vector<8x1xf32>
    %170 = tpu.reciprocal %169 {approx = true} : vector<8x1xf32> -> vector<8x1xf32>
    %171 = vector.broadcast %170 : vector<8x1xf32> to vector<8x8xf32>
    %172 = arith.mulf %167, %171 : vector<8x8xf32>
    %173 = arith.truncf %172 : vector<8x8xf32> to vector<8x8xbf16>
    %174 = vector.extract_strided_slice %40 {offsets = [0, 28], sizes = [8, 4], strides = [1, 1]} : vector<8x32xbf16> to vector<8x4xbf16>
    %cst_53 = arith.constant dense<0.000000e+00> : vector<8x4xf32>
    %175 = tpu.matmul %173, %174, %cst_53 {dimension_numbers = #tpu.dot_dimension_numbers<[1], [0], [0], [1], [0, 0, 1, 1], [], []>} : vector<8x8xbf16>, vector<8x4xbf16>, vector<8x4xf32> -> vector<8x4xf32>
    %c0_54 = arith.constant 0 : index
    %c28 = arith.constant 28 : index
    %176 = vector.load %arg14[%c0_54, %c28] : memref<8x32xf32, #tpu.memory_space<vmem>>, vector<8x4xf32>
    tpu.vector_store %arg14[%c0_54, %c28], %175 {strides = array<i32>} : memref<8x32xf32, #tpu.memory_space<vmem>>, vector<8x4xf32>,
    %c0_55 = arith.constant 0 : index
    %c0_56 = arith.constant 0 : index
    %177 = vector.load %arg14[%c0_55, %c0_56] : memref<8x32xf32, #tpu.memory_space<vmem>>, vector<8x32xf32>
    %178 = arith.truncf %177 : vector<8x32xf32> to vector<8x32xbf16>
    %c0_57 = arith.constant 0 : index
    %c0_58 = arith.constant 0 : index
    %179 = vector.load %arg5[%c0_57, %c0_58] : memref<32x32xbf16, #tpu.memory_space<vmem>>, vector<32x32xbf16>
    %cst_59 = arith.constant dense<0.000000e+00> : vector<8x32xf32>
    %180 = tpu.matmul %178, %179, %cst_59 {dimension_numbers = #tpu.dot_dimension_numbers<[1], [0], [0], [1], [0, 0, 1, 1], [], []>} : vector<8x32xbf16>, vector<32x32xbf16>, vector<8x32xf32> -> vector<8x32xf32>
    %c0_60 = arith.constant 0 : index
    %c0_61 = arith.constant 0 : index
    %181 = vector.load %arg6[%c0_60, %c0_61] : memref<1x32xf32, #tpu.memory_space<vmem>>, vector<1x32xf32>
    %182 = vector.shape_cast %181 : vector<1x32xf32> to vector<32xf32>
    %183 = vector.shape_cast %182 : vector<32xf32> to vector<1x32xf32>
    %184 = vector.broadcast %183 : vector<1x32xf32> to vector<8x32xf32>
    %185 = arith.addf %180, %184 : vector<8x32xf32>
    %186 = arith.addf %1, %185 : vector<8x32xf32>
    %cst_62 = arith.constant dense<0.000000e+00> : vector<8xf32>
    %187 = vector.multi_reduction <add>, %186, %cst_62 [1] : vector<8x32xf32> to vector<8xf32>
    %188 = vector.shape_cast %187 : vector<8xf32> to vector<8x1xf32>
    %cst_63 = arith.constant 3.200000e+01 : f32
    %189 = vector.broadcast %cst_63 : f32 to vector<8x1xf32>
    %190 = arith.divf %188, %189 : vector<8x1xf32>
    %191 = vector.broadcast %190 : vector<8x1xf32> to vector<8x32xf32>
    %192 = arith.subf %186, %191 : vector<8x32xf32>
    %193 = arith.mulf %192, %192 : vector<8x32xf32>
    %cst_64 = arith.constant dense<0.000000e+00> : vector<8xf32>
    %194 = vector.multi_reduction <add>, %193, %cst_64 [1] : vector<8x32xf32> to vector<8xf32>
    %195 = vector.shape_cast %194 : vector<8xf32> to vector<8x1xf32>
    %cst_65 = arith.constant 3.200000e+01 : f32
    %196 = vector.broadcast %cst_65 : f32 to vector<8x1xf32>
    %197 = arith.divf %195, %196 : vector<8x1xf32>
    %198 = vector.broadcast %190 : vector<8x1xf32> to vector<8x32xf32>
    %199 = arith.subf %186, %198 : vector<8x32xf32>
    %cst_66 = arith.constant 9.99999974E-6 : f32
    %200 = vector.broadcast %cst_66 : f32 to vector<8x1xf32>
    %201 = arith.addf %197, %200 : vector<8x1xf32>
    %202 = math.rsqrt %201 : vector<8x1xf32>
    %203 = vector.broadcast %202 : vector<8x1xf32> to vector<8x32xf32>
    %204 = arith.mulf %199, %203 : vector<8x32xf32>
    %c0_67 = arith.constant 0 : index
    %c0_68 = arith.constant 0 : index
    %205 = vector.load %arg7[%c0_67, %c0_68] : memref<1x32xf32, #tpu.memory_space<vmem>>, vector<1x32xf32>
    %206 = vector.shape_cast %205 : vector<1x32xf32> to vector<32xf32>
    %207 = vector.shape_cast %206 : vector<32xf32> to vector<1x32xf32>
    %208 = vector.broadcast %207 : vector<1x32xf32> to vector<8x32xf32>
    %209 = arith.mulf %204, %208 : vector<8x32xf32>
    %c0_69 = arith.constant 0 : index
    %c0_70 = arith.constant 0 : index
    %210 = vector.load %arg8[%c0_69, %c0_70] : memref<1x32xf32, #tpu.memory_space<vmem>>, vector<1x32xf32>
    %211 = vector.shape_cast %210 : vector<1x32xf32> to vector<32xf32>
    %212 = vector.shape_cast %211 : vector<32xf32> to vector<1x32xf32>
    %213 = vector.broadcast %212 : vector<1x32xf32> to vector<8x32xf32>
    %214 = arith.addf %209, %213 : vector<8x32xf32>
    %215 = arith.truncf %214 : vector<8x32xf32> to vector<8x32xbf16>
    %c0_71 = arith.constant 0 : index
    %c0_72 = arith.constant 0 : index
    %216 = vector.load %arg9[%c0_71, %c0_72] : memref<32x64xbf16, #tpu.memory_space<vmem>>, vector<32x64xbf16>
    %cst_73 = arith.constant dense<0.000000e+00> : vector<8x64xf32>
    %217 = tpu.matmul %215, %216, %cst_73 {dimension_numbers = #tpu.dot_dimension_numbers<[1], [0], [0], [1], [0, 0, 1, 1], [], []>} : vector<8x32xbf16>, vector<32x64xbf16>, vector<8x64xf32> -> vector<8x64xf32>
    %c0_74 = arith.constant 0 : index
    %c0_75 = arith.constant 0 : index
    %218 = vector.load %arg10[%c0_74, %c0_75] : memref<1x64xf32, #tpu.memory_space<vmem>>, vector<1x64xf32>
    %219 = vector.shape_cast %218 : vector<1x64xf32> to vector<64xf32>
    %220 = vector.shape_cast %219 : vector<64xf32> to vector<1x64xf32>
    %221 = vector.broadcast %220 : vector<1x64xf32> to vector<8x64xf32>
    %222 = arith.addf %217, %221 : vector<8x64xf32>
    %cst_76 = arith.constant 5.000000e-01 : f32
    %223 = vector.broadcast %cst_76 : f32 to vector<8x64xf32>
    %224 = arith.mulf %223, %222 : vector<8x64xf32>
    %cst_77 = arith.constant 0.707106769 : f32
    %225 = vector.broadcast %cst_77 : f32 to vector<8x64xf32>
    %226 = arith.mulf %222, %225 : vector<8x64xf32>
    %227 = math.erf %226 : vector<8x64xf32>
    %cst_78 = arith.constant 1.000000e+00 : f32
    %228 = vector.broadcast %cst_78 : f32 to vector<8x64xf32>
    %229 = arith.addf %228, %227 : vector<8x64xf32>
    %230 = arith.mulf %224, %229 : vector<8x64xf32>
    %231 = arith.truncf %230 : vector<8x64xf32> to vector<8x64xbf16>
    %c0_79 = arith.constant 0 : index
    %c0_80 = arith.constant 0 : index
    %232 = vector.load %arg11[%c0_79, %c0_80] : memref<64x32xbf16, #tpu.memory_space<vmem>>, vector<64x32xbf16>
    %cst_81 = arith.constant dense<0.000000e+00> : vector<8x32xf32>
    %233 = tpu.matmul %231, %232, %cst_81 {dimension_numbers = #tpu.dot_dimension_numbers<[1], [0], [0], [1], [0, 0, 1, 1], [], []>} : vector<8x64xbf16>, vector<64x32xbf16>, vector<8x32xf32> -> vector<8x32xf32>
    %c0_82 = arith.constant 0 : index
    %c0_83 = arith.constant 0 : index
    %234 = vector.load %arg12[%c0_82, %c0_83] : memref<1x32xf32, #tpu.memory_space<vmem>>, vector<1x32xf32>
    %235 = vector.shape_cast %234 : vector<1x32xf32> to vector<32xf32>
    %236 = vector.shape_cast %235 : vector<32xf32> to vector<1x32xf32>
    %237 = vector.broadcast %236 : vector<1x32xf32> to vector<8x32xf32>
    %238 = arith.addf %233, %237 : vector<8x32xf32>
    %239 = arith.addf %186, %238 : vector<8x32xf32>
    %c0_84 = arith.constant 0 : index
    %c0_85 = arith.constant 0 : index
    %c0_86 = arith.constant 0 : index
    %240 = vector.load %arg13[%c0_84, %c0_85, %c0_86] : memref<1x8x32xf32, #tpu.memory_space<vmem>>, vector<1x8x32xf32>
    %241 = vector.shape_cast %240 : vector<1x8x32xf32> to vector<8x32xf32>
    %242 = vector.shape_cast %239 : vector<8x32xf32> to vector<1x8x32xf32>
    tpu.vector_store %arg13[%c0_84, %c0_85, %c0_86], %242 {strides = array<i32>} : memref<1x8x32xf32, #tpu.memory_space<vmem>>, vector<1x8x32xf32>,
    return
  }
  func.func @transform_0(%arg0: i32) -> (i32, i32, i32) {
    %c0_i32 = arith.constant 0 : i32
    %c0_i32_0 = arith.constant 0 : i32
    %c0_i32_1 = arith.constant 0 : i32
    return %arg0, %c0_i32, %c0_i32_0 : i32, i32, i32
  }
  func.func @transform_1(%arg0: i32) -> (i32, i32) {
    %c0_i32 = arith.constant 0 : i32
    %c0_i32_0 = arith.constant 0 : i32
    %c0_i32_1 = arith.constant 0 : i32
    return %c0_i32, %c0_i32_0 : i32, i32
  }
  func.func @transform_2(%arg0: i32) -> (i32, i32) {
    %c0_i32 = arith.constant 0 : i32
    %c0_i32_0 = arith.constant 0 : i32
    %c0_i32_1 = arith.constant 0 : i32
    return %c0_i32, %c0_i32_0 : i32, i32
  }
  func.func @transform_3(%arg0: i32) -> (i32, i32) {
    %c0_i32 = arith.constant 0 : i32
    %c0_i32_0 = arith.constant 0 : i32
    %c0_i32_1 = arith.constant 0 : i32
    return %c0_i32, %c0_i32_0 : i32, i32
  }
  func.func @transform_4(%arg0: i32) -> (i32, i32) {
    %c0_i32 = arith.constant 0 : i32
    %c0_i32_0 = arith.constant 0 : i32
    %c0_i32_1 = arith.constant 0 : i32
    return %c0_i32, %c0_i32_0 : i32, i32
  }
  func.func @transform_5(%arg0: i32) -> (i32, i32) {
    %c0_i32 = arith.constant 0 : i32
    %c0_i32_0 = arith.constant 0 : i32
    %c0_i32_1 = arith.constant 0 : i32
    return %c0_i32, %c0_i32_0 : i32, i32
  }
  func.func @transform_6(%arg0: i32) -> (i32, i32) {
    %c0_i32 = arith.constant 0 : i32
    %c0_i32_0 = arith.constant 0 : i32
    %c0_i32_1 = arith.constant 0 : i32
    return %c0_i32, %c0_i32_0 : i32, i32
  }
  func.func @transform_7(%arg0: i32) -> (i32, i32) {
    %c0_i32 = arith.constant 0 : i32
    %c0_i32_0 = arith.constant 0 : i32
    %c0_i32_1 = arith.constant 0 : i32
    return %c0_i32, %c0_i32_0 : i32, i32
  }
  func.func @transform_8(%arg0: i32) -> (i32, i32) {
    %c0_i32 = arith.constant 0 : i32
    %c0_i32_0 = arith.constant 0 : i32
    %c0_i32_1 = arith.constant 0 : i32
    return %c0_i32, %c0_i32_0 : i32, i32
  }
  func.func @transform_9(%arg0: i32) -> (i32, i32) {
    %c0_i32 = arith.constant 0 : i32
    %c0_i32_0 = arith.constant 0 : i32
    %c0_i32_1 = arith.constant 0 : i32
    return %c0_i32, %c0_i32_0 : i32, i32
  }
  func.func @transform_10(%arg0: i32) -> (i32, i32) {
    %c0_i32 = arith.constant 0 : i32
    %c0_i32_0 = arith.constant 0 : i32
    %c0_i32_1 = arith.constant 0 : i32
    return %c0_i32, %c0_i32_0 : i32, i32
  }
  func.func @transform_11(%arg0: i32) -> (i32, i32) {
    %c0_i32 = arith.constant 0 : i32
    %c0_i32_0 = arith.constant 0 : i32
    %c0_i32_1 = arith.constant 0 : i32
    return %c0_i32, %c0_i32_0 : i32, i32
  }
  func.func @transform_12(%arg0: i32) -> (i32, i32, i32) {
    %c0_i32 = arith.constant 0 : i32
    %c0_i32_0 = arith.constant 0 : i32
    %c0_i32_1 = arith.constant 0 : i32
    return %arg0, %c0_i32, %c0_i32_0 : i32, i32, i32
  }
}

</mosaic_0001>

<llo_original>
// kernel: tpu_custom_call.1
$region0: #{tpu_custom_call.1}
  #allocation0 [shape = 'u32[]', space=smem, size = 0x4, offset = 0x4, fixed_abs, tag = 'smem constant byte address 0x4 - core index']
  #allocation1 [shape = 'u32[144,128]{1,0:T(1,128)}', space=vmem, size = 0x12000, scoped, tag = 'internal scratch']
  #allocation2 [shape = 'f32[8,32]{1,0:T(8,128)}', space=vmem, size = 0x1000, scoped, tag = 'scratch operand']
  %s0 = inlined_call_operand.vmem [shape: f32[2,8,32], index: 0, kind: input, shape index: {}]
  %s1 = inlined_call_operand.vmem [shape: f32[1,32], index: 1, kind: input, shape index: {}]
  %s2 = inlined_call_operand.vmem [shape: f32[1,32], index: 2, kind: input, shape index: {}]
  %s3 = inlined_call_operand.vmem [shape: bf16[32,96], index: 3, kind: input, shape index: {}]
  %s4 = inlined_call_operand.vmem [shape: bf16[32,32], index: 4, kind: input, shape index: {}]
  %s5 = inlined_call_operand.hbm [shape: f32[1,32], index: 5, kind: input, shape index: {}]
  %s6 = inlined_call_operand.hbm [shape: f32[1,32], index: 6, kind: input, shape index: {}]
  %s7 = inlined_call_operand.hbm [shape: f32[1,32], index: 7, kind: input, shape index: {}]
  %s8 = inlined_call_operand.hbm [shape: bf16[32,64], index: 8, kind: input, shape index: {}]
  %s9 = inlined_call_operand.hbm [shape: f32[1,64], index: 9, kind: input, shape index: {}]
  %s10 = inlined_call_operand.vmem [shape: bf16[64,32], index: 10, kind: input, shape index: {}]
  %s11 = inlined_call_operand.vmem [shape: f32[1,32], index: 11, kind: input, shape index: {}]
  %s12 = inlined_call_operand.hbm [shape: f32[2,8,32], index: 12, kind: output, shape index: {}]
  %s13 = sld [smem:[#allocation0]]
  $region101: #{tpu_custom_call.1} parent=0
    _
  %s15 = ssub.s32 1, %s13
  %s16 = scalar_select 0, %s15, %s13
  $region1: #{tpu_custom_call.1} parent=0
    #allocation3 [shape = 'u8[512]{0}', space=vmem, size = 0x400, scoped, tag = 'input window, operand 5, single buffered']
    #allocation4 [shape = 's32[2]{0}', space=sflag, size = 0x8, scoped, tag = 'scoped memory for tpu_custom_call.1']
    #allocation5 [shape = 's32[2]{0}', space=sflag, size = 0x8, scoped, tag = 'scoped memory for tpu_custom_call.1']
    #allocation6 [shape = 'u8[512]{0}', space=vmem, size = 0x400, scoped, tag = 'input window, operand 6, single buffered']
    #allocation7 [shape = 's32[1]{0}', space=sflag, size = 0x4, scoped, tag = 'scoped memory for tpu_custom_call.1']
    #allocation8 [shape = 'u8[512]{0}', space=vmem, size = 0x400, scoped, tag = 'input window, operand 7, single buffered']
    #allocation9 [shape = 'u8[8192]{0}', space=vmem, size = 0x2000, scoped, tag = 'input window, operand 8, single buffered']
    #allocation10 [shape = 's32[1]{0}', space=sflag, size = 0x4, scoped, tag = 'scoped memory for tpu_custom_call.1']
    #allocation11 [shape = 'u8[512]{0}', space=vmem, size = 0x400, scoped, tag = 'input window, operand 9, single buffered']
    #allocation12 [shape = 'u8[8192]{0}', space=vmem, size = 0x2000, scoped, tag = 'output window, operand 0']
    %17 = vsyncpa [#allocation4], 0
    %18 = vsyncpa [#allocation7], 0
    %19 = vsyncpa [#allocation10], 0
    %20 = vsyncpa [#allocation5], 0
    %s21 = scalar_lea.sflag [#allocation5], 1
    %22 = vsyncpa %s21, 0
    loop: start=0, step=1, limit=4
    $region2: #{tpu_custom_call.1} parent=1 // loop_pre_header
      _
    $region3: #{tpu_custom_call.1} parent=1 // loop_header
      %s24 = sphi 0, %s28
      %p25 = scmp.ge.s32.totalorder %s24, 4
      %s34 = sphi 0, %s36
      %s37 = sphi 0, %s34
      %s38 = sphi 0, %s37
      %s54 = sphi 0, %s38
      %s58 = sphi 0, %s58
      %s60 = sphi 0, %s58
      %s61 = sphi 0, %s60
      %s75 = sphi 0, %s61
      %s79 = sphi 0, %s79
      %s81 = sphi 0, %s79
      %s82 = sphi 0, %s81
      %s96 = sphi 0, %s82
      %s100 = sphi 0, %s100
      %s102 = sphi 0, %s100
      %s103 = sphi 0, %s102
      %s117 = sphi 0, %s103
      %s121 = sphi 0, %s121
      %s123 = sphi 0, %s121
      %s124 = sphi 0, %s123
      %s138 = sphi 0, %s124
      %s142 = sphi 0, %s142
      %s144 = sphi 0, %s142
      %s145 = sphi 0, %s144
      %s159 = sphi 0, %s145
      %s163 = sphi 0, %s163
      %s165 = sphi 0, %s163
      %s166 = sphi 0, %s165
      %s180 = sphi 0, %s166
      %s184 = sphi 0, %s184
      %s186 = sphi 0, %s184
      %s187 = sphi 0, %s186
      %s201 = sphi 0, %s187
      %s205 = sphi 0, %s205
      %s207 = sphi 0, %s205
      %s208 = sphi 0, %s207
      %s222 = sphi 0, %s208
      %s226 = sphi 0, %s226
      %s228 = sphi 0, %s226
      %s229 = sphi 0, %s228
      %s243 = sphi 0, %s229
      %s247 = sphi 0, %s247
      %s249 = sphi 0, %s247
      %s250 = sphi 0, %s249
      %s264 = sphi 0, %s250
      %s268 = sphi 0, %s268
      %s270 = sphi 0, %s268
      %s271 = sphi 0, %s270
      %s285 = sphi 0, %s271
      %s291 = sphi 0, %s293
      %s294 = sphi 0, %s291
      %s295 = sphi 0, %s294
      %s311 = sphi 0, %s295
    $region4: #{tpu_custom_call.1} parent=1 // loop_header_branch
      %27 = sbr.rel (%p25) target = $region8
    $region5: #{tpu_custom_call.1} parent=1 // loop_body
      %s29 = ssub.s32 %s24, 1
      %s30 = ssub.s32 %s24, 2
      %s31 = sadd.s32 %s24, 1
      %s32 = ssub.s32 %s24, %s31
      %p33 = scmp.eq.s32.totalorder %s32, 0
      %s35 = sadd.s32 %s34, 1
      %s36 = scalar_select %p33, %s34, %s35
      %p39 = pneg %p33
      %p40 = scmp.eq.s32.totalorder %s24, 1
      %p41 = por %p39, %p40
      %p42 = scmp.ne.s32.totalorder %s34, %s37
      %p43 = scmp.eq.s32.totalorder %s24, 0
      %p44 = por %p42, %p43
      %p45 = scmp.ne.s32.totalorder %s34, %s37
      %p46 = scmp.eq.s32.totalorder %s29, 1
      %p47 = por %p45, %p46
      %p48 = scmp.ne.s32.totalorder %s37, %s38
      %p49 = scmp.eq.s32.totalorder %s29, 0
      %p50 = por %p48, %p49
      %p51 = scmp.ne.s32.totalorder %s37, %s38
      %p52 = scmp.eq.s32.totalorder %s30, 1
      %p53 = por %p51, %p52
      %p55 = scmp.ne.s32.totalorder %s38, %s54
      %p56 = scmp.eq.s32.totalorder %s30, 0
      %p57 = por %p55, %p56
      %s59 = sadd.s32 %s58, 1
      %p62 = scmp.eq.s32.totalorder %s24, 1
      %p63 = scmp.ne.s32.totalorder %s58, %s60
      %p64 = scmp.eq.s32.totalorder %s24, 0
      %p65 = por %p63, %p64
      %p66 = scmp.ne.s32.totalorder %s58, %s60
      %p67 = scmp.eq.s32.totalorder %s29, 1
      %p68 = por %p66, %p67
      %p69 = scmp.ne.s32.totalorder %s60, %s61
      %p70 = scmp.eq.s32.totalorder %s29, 0
      %p71 = por %p69, %p70
      %p72 = scmp.ne.s32.totalorder %s60, %s61
      %p73 = scmp.eq.s32.totalorder %s30, 1
      %p74 = por %p72, %p73
      %p76 = scmp.ne.s32.totalorder %s61, %s75
      %p77 = scmp.eq.s32.totalorder %s30, 0
      %p78 = por %p76, %p77
      %s80 = sadd.s32 %s79, 1
      %p83 = scmp.eq.s32.totalorder %s24, 1
      %p84 = scmp.ne.s32.totalorder %s79, %s81
      %p85 = scmp.eq.s32.totalorder %s24, 0
      %p86 = por %p84, %p85
      %p87 = scmp.ne.s32.totalorder %s79, %s81
      %p88 = scmp.eq.s32.totalorder %s29, 1
      %p89 = por %p87, %p88
      %p90 = scmp.ne.s32.totalorder %s81, %s82
      %p91 = scmp.eq.s32.totalorder %s29, 0
      %p92 = por %p90, %p91
      %p93 = scmp.ne.s32.totalorder %s81, %s82
      %p94 = scmp.eq.s32.totalorder %s30, 1
      %p95 = por %p93, %p94
      %p97 = scmp.ne.s32.totalorder %s82, %s96
      %p98 = scmp.eq.s32.totalorder %s30, 0
      %p99 = por %p97, %p98
      %s101 = sadd.s32 %s100, 1
      %p104 = scmp.eq.s32.totalorder %s24, 1
      %p105 = scmp.ne.s32.totalorder %s100, %s102
      %p106 = scmp.eq.s32.totalorder %s24, 0
      %p107 = por %p105, %p106
      %p108 = scmp.ne.s32.totalorder %s100, %s102
      %p109 = scmp.eq.s32.totalorder %s29, 1
      %p110 = por %p108, %p109
      %p111 = scmp.ne.s32.totalorder %s102, %s103
      %p112 = scmp.eq.s32.totalorder %s29, 0
      %p113 = por %p111, %p112
      %p114 = scmp.ne.s32.totalorder %s102, %s103
      %p115 = scmp.eq.s32.totalorder %s30, 1
      %p116 = por %p114, %p115
      %p118 = scmp.ne.s32.totalorder %s103, %s117
      %p119 = scmp.eq.s32.totalorder %s30, 0
      %p120 = por %p118, %p119
      %s122 = sadd.s32 %s121, 1
      %p125 = scmp.eq.s32.totalorder %s24, 1
      %p126 = scmp.ne.s32.totalorder %s121, %s123
      %p127 = scmp.eq.s32.totalorder %s24, 0
      %p128 = por %p126, %p127
      %p129 = scmp.ne.s32.totalorder %s121, %s123
      %p130 = scmp.eq.s32.totalorder %s29, 1
      %p131 = por %p129, %p130
      %p132 = scmp.ne.s32.totalorder %s123, %s124
      %p133 = scmp.eq.s32.totalorder %s29, 0
      %p134 = por %p132, %p133
      %p135 = scmp.ne.s32.totalorder %s123, %s124
      %p136 = scmp.eq.s32.totalorder %s30, 1
      %p137 = por %p135, %p136
      %p139 = scmp.ne.s32.totalorder %s124, %s138
      %p140 = scmp.eq.s32.totalorder %s30, 0
      %p141 = por %p139, %p140
      %s143 = sadd.s32 %s142, 1
      %p146 = scmp.eq.s32.totalorder %s24, 1
      %p147 = scmp.ne.s32.totalorder %s142, %s144
      %p148 = scmp.eq.s32.totalorder %s24, 0
      %p149 = por %p147, %p148
      %p150 = scmp.ne.s32.totalorder %s142, %s144
      %p151 = scmp.eq.s32.totalorder %s29, 1
      %p152 = por %p150, %p151
      %p153 = scmp.ne.s32.totalorder %s144, %s145
      %p154 = scmp.eq.s32.totalorder %s29, 0
      %p155 = por %p153, %p154
      %p156 = scmp.ne.s32.totalorder %s144, %s145
      %p157 = scmp.eq.s32.totalorder %s30, 1
      %p158 = por %p156, %p157
      %p160 = scmp.ne.s32.totalorder %s145, %s159
      %p161 = scmp.eq.s32.totalorder %s30, 0
      %p162 = por %p160, %p161
      %s164 = sadd.s32 %s163, 1
      %p167 = scmp.eq.s32.totalorder %s24, 1
      %p168 = scmp.ne.s32.totalorder %s163, %s165
      %p169 = scmp.eq.s32.totalorder %s24, 0
      %p170 = por %p168, %p169
      %p171 = scmp.ne.s32.totalorder %s163, %s165
      %p172 = scmp.eq.s32.totalorder %s29, 1
      %p173 = por %p171, %p172
      %p174 = scmp.ne.s32.totalorder %s165, %s166
      %p175 = scmp.eq.s32.totalorder %s29, 0
      %p176 = por %p174, %p175
      %p177 = scmp.ne.s32.totalorder %s165, %s166
      %p178 = scmp.eq.s32.totalorder %s30, 1
      %p179 = por %p177, %p178
      %p181 = scmp.ne.s32.totalorder %s166, %s180
      %p182 = scmp.eq.s32.totalorder %s30, 0
      %p183 = por %p181, %p182
      %s185 = sadd.s32 %s184, 1
      %p188 = scmp.eq.s32.totalorder %s24, 1
      %p189 = scmp.ne.s32.totalorder %s184, %s186
      %p190 = scmp.eq.s32.totalorder %s24, 0
      %p191 = por %p189, %p190
      %p192 = scmp.ne.s32.totalorder %s184, %s186
      %p193 = scmp.eq.s32.totalorder %s29, 1
      %p194 = por %p192, %p193
      %p195 = scmp.ne.s32.totalorder %s186, %s187
      %p196 = scmp.eq.s32.totalorder %s29, 0
      %p197 = por %p195, %p196
      %p198 = scmp.ne.s32.totalorder %s186, %s187
      %p199 = scmp.eq.s32.totalorder %s30, 1
      %p200 = por %p198, %p199
      %p202 = scmp.ne.s32.totalorder %s187, %s201
      %p203 = scmp.eq.s32.totalorder %s30, 0
      %p204 = por %p202, %p203
      %s206 = sadd.s32 %s205, 1
      %p209 = scmp.eq.s32.totalorder %s24, 1
      %p210 = scmp.ne.s32.totalorder %s205, %s207
      %p211 = scmp.eq.s32.totalorder %s24, 0
      %p212 = por %p210, %p211
      %p213 = scmp.ne.s32.totalorder %s205, %s207
      %p214 = scmp.eq.s32.totalorder %s29, 1
      %p215 = por %p213, %p214
      %p216 = scmp.ne.s32.totalorder %s207, %s208
      %p217 = scmp.eq.s32.totalorder %s29, 0
      %p218 = por %p216, %p217
      %p219 = scmp.ne.s32.totalorder %s207, %s208
      %p220 = scmp.eq.s32.totalorder %s30, 1
      %p221 = por %p219, %p220
      %p223 = scmp.ne.s32.totalorder %s208, %s222
      %p224 = scmp.eq.s32.totalorder %s30, 0
      %p225 = por %p223, %p224
      %s227 = sadd.s32 %s226, 1
      %p230 = scmp.eq.s32.totalorder %s24, 1
      %p231 = scmp.ne.s32.totalorder %s226, %s228
      %p232 = scmp.eq.s32.totalorder %s24, 0
      %p233 = por %p231, %p232
      %p234 = scmp.ne.s32.totalorder %s226, %s228
      %p235 = scmp.eq.s32.totalorder %s29, 1
      %p236 = por %p234, %p235
      %p237 = scmp.ne.s32.totalorder %s228, %s229
      %p238 = scmp.eq.s32.totalorder %s29, 0
      %p239 = por %p237, %p238
      %p240 = scmp.ne.s32.totalorder %s228, %s229
      %p241 = scmp.eq.s32.totalorder %s30, 1
      %p242 = por %p240, %p241
      %p244 = scmp.ne.s32.totalorder %s229, %s243
      %p245 = scmp.eq.s32.totalorder %s30, 0
      %p246 = por %p244, %p245
      %s248 = sadd.s32 %s247, 1
      %p251 = scmp.eq.s32.totalorder %s24, 1
      %p252 = scmp.ne.s32.totalorder %s247, %s249
      %p253 = scmp.eq.s32.totalorder %s24, 0
      %p254 = por %p252, %p253
      %p255 = scmp.ne.s32.totalorder %s247, %s249
      %p256 = scmp.eq.s32.totalorder %s29, 1
      %p257 = por %p255, %p256
      %p258 = scmp.ne.s32.totalorder %s249, %s250
      %p259 = scmp.eq.s32.totalorder %s29, 0
      %p260 = por %p258, %p259
      %p261 = scmp.ne.s32.totalorder %s249, %s250
      %p262 = scmp.eq.s32.totalorder %s30, 1
      %p263 = por %p261, %p262
      %p265 = scmp.ne.s32.totalorder %s250, %s264
      %p266 = scmp.eq.s32.totalorder %s30, 0
      %p267 = por %p265, %p266
      %s269 = sadd.s32 %s268, 1
      %p272 = scmp.eq.s32.totalorder %s24, 1
      %p273 = scmp.ne.s32.totalorder %s268, %s270
      %p274 = scmp.eq.s32.totalorder %s24, 0
      %p275 = por %p273, %p274
      %p276 = scmp.ne.s32.totalorder %s268, %s270
      %p277 = scmp.eq.s32.totalorder %s29, 1
      %p278 = por %p276, %p277
      %p279 = scmp.ne.s32.totalorder %s270, %s271
      %p280 = scmp.eq.s32.totalorder %s29, 0
      %p281 = por %p279, %p280
      %p282 = scmp.ne.s32.totalorder %s270, %s271
      %p283 = scmp.eq.s32.totalorder %s30, 1
      %p284 = por %p282, %p283
      %p286 = scmp.ne.s32.totalorder %s271, %s285
      %p287 = scmp.eq.s32.totalorder %s30, 0
      %p288 = por %p286, %p287
      %s289 = ssub.s32 %s24, %s31
      %p290 = scmp.eq.s32.totalorder %s289, 0
      %s292 = sadd.s32 %s291, 1
      %s293 = scalar_select %p290, %s291, %s292
      %p296 = pneg %p290
      %p297 = scmp.eq.s32.totalorder %s24, 1
      %p298 = por %p296, %p297
      %p299 = scmp.ne.s32.totalorder %s291, %s294
      %p300 = scmp.eq.s32.totalorder %s24, 0
      %p301 = por %p299, %p300
      %p302 = scmp.ne.s32.totalorder %s291, %s294
      %p303 = scmp.eq.s32.totalorder %s29, 1
      %p304 = por %p302, %p303
      %p305 = scmp.ne.s32.totalorder %s294, %s295
      %p306 = scmp.eq.s32.totalorder %s29, 0
      %p307 = por %p305, %p306
      %p308 = scmp.ne.s32.totalorder %s294, %s295
      %p309 = scmp.eq.s32.totalorder %s30, 1
      %p310 = por %p308, %p309
      %p312 = scmp.ne.s32.totalorder %s295, %s311
      %p313 = scmp.eq.s32.totalorder %s30, 0
      %p314 = por %p312, %p313
      %p315 = scmp.le.s32.totalorder 1, %s24
      %p316 = scmp.lt.s32.totalorder %s24, 3
      %p317 = pnand %p315, %p316
      %p318 = pneg %p317
      // Predicated region
      $region9: #{tpu_custom_call.1} parent=5 // pred_check
        _
      $region10: #{tpu_custom_call.1} parent=5 // pred_check_branch
        %320 = sbr.rel (%p317) target = $region12
      $region11: #{tpu_custom_call.1} parent=5 // pred_region
        %s321 = ssub.s32 %s24, 1
        // Predicated region
        $region13: #{tpu_custom_call.1} parent=11 // pred_check
          %p322 = pneg %p71
        $region14: #{tpu_custom_call.1} parent=11 // pred_check_branch
          %324 = sbr.rel (%p322) target = $region16
        $region15: #{tpu_custom_call.1} parent=11 // pred_region
          _
        $region16: #{tpu_custom_call.1} parent=11 // pred_fallthru
          _
        // Predicated region
        $region17: #{tpu_custom_call.1} parent=11 // pred_check
          %p325 = pneg %p92
        $region18: #{tpu_custom_call.1} parent=11 // pred_check_branch
          %327 = sbr.rel (%p325) target = $region20
        $region19: #{tpu_custom_call.1} parent=11 // pred_region
          _
        $region20: #{tpu_custom_call.1} parent=11 // pred_fallthru
          _
        // Predicated region
        $region21: #{tpu_custom_call.1} parent=11 // pred_check
          %p328 = pneg %p113
        $region22: #{tpu_custom_call.1} parent=11 // pred_check_branch
          %330 = sbr.rel (%p328) target = $region24
        $region23: #{tpu_custom_call.1} parent=11 // pred_region
          _
        $region24: #{tpu_custom_call.1} parent=11 // pred_fallthru
          _
        // Predicated region
        $region25: #{tpu_custom_call.1} parent=11 // pred_check
          %p331 = pneg %p134
        $region26: #{tpu_custom_call.1} parent=11 // pred_check_branch
          %333 = sbr.rel (%p331) target = $region28
        $region27: #{tpu_custom_call.1} parent=11 // pred_region
          _
        $region28: #{tpu_custom_call.1} parent=11 // pred_fallthru
          _
        // Predicated region
        $region29: #{tpu_custom_call.1} parent=11 // pred_check
          %p334 = pneg %p155
        $region30: #{tpu_custom_call.1} parent=11 // pred_check_branch
          %336 = sbr.rel (%p334) target = $region32
        $region31: #{tpu_custom_call.1} parent=11 // pred_region
          %s338 = ssub.s32 16, 16
          %339 = vsyncadd [#allocation4], %s338
          %s341 = sshll.u32 [#allocation3], 4
          %s342 = int_to_ptr.vmem [resolvable:$true] %s341
          %344 = dma.hbm_to_vmem [thread:$0]  %s5, 16, %s342, [#allocation4]
        $region32: #{tpu_custom_call.1} parent=11 // pred_fallthru
          _
        // Predicated region
        $region33: #{tpu_custom_call.1} parent=11 // pred_check
          %p345 = pneg %p176
        $region34: #{tpu_custom_call.1} parent=11 // pred_check_branch
          %347 = sbr.rel (%p345) target = $region36
        $region35: #{tpu_custom_call.1} parent=11 // pred_region
          %s349 = ssub.s32 16, 16
          %350 = vsyncadd [#allocation7], %s349
          %s352 = sshll.u32 [#allocation6], 4
          %s353 = int_to_ptr.vmem [resolvable:$true] %s352
          %355 = dma.hbm_to_vmem [thread:$0]  %s6, 16, %s353, [#allocation7]
        $region36: #{tpu_custom_call.1} parent=11 // pred_fallthru
          _
        // Predicated region
        $region37: #{tpu_custom_call.1} parent=11 // pred_check
          %p356 = pneg %p197
        $region38: #{tpu_custom_call.1} parent=11 // pred_check_branch
          %358 = sbr.rel (%p356) target = $region40
        $region39: #{tpu_custom_call.1} parent=11 // pred_region
          %s360 = ssub.s32 16, 16
          %361 = vsyncadd [#allocation7], %s360
          %s363 = sshll.u32 [#allocation8], 4
          %s364 = int_to_ptr.vmem [resolvable:$true] %s363
          %366 = dma.hbm_to_vmem [thread:$0]  %s7, 16, %s364, [#allocation7]
        $region40: #{tpu_custom_call.1} parent=11 // pred_fallthru
          _
        // Predicated region
        $region41: #{tpu_custom_call.1} parent=11 // pred_check
          %p367 = pneg %p218
        $region42: #{tpu_custom_call.1} parent=11 // pred_check_branch
          %369 = sbr.rel (%p367) target = $region44
        $region43: #{tpu_custom_call.1} parent=11 // pred_region
          %s371 = ssub.s32 256, 256
          %372 = vsyncadd [#allocation10], %s371
          %s373 = sshll.u32 [#allocation9], 4
          %s374 = int_to_ptr.vmem [resolvable:$true] %s373
          %379 = dma.hbm_to_vmem [thread:$0]  %s8, 256, %s374, [#allocation10], 64, 64, 4
        $region44: #{tpu_custom_call.1} parent=11 // pred_fallthru
          _
        // Predicated region
        $region45: #{tpu_custom_call.1} parent=11 // pred_check
          %p380 = pneg %p239
        $region46: #{tpu_custom_call.1} parent=11 // pred_check_branch
          %382 = sbr.rel (%p380) target = $region48
        $region47: #{tpu_custom_call.1} parent=11 // pred_region
          %s384 = ssub.s32 16, 16
          %385 = vsyncadd [#allocation10], %s384
          %s387 = sshll.u32 [#allocation11], 4
          %s388 = int_to_ptr.vmem [resolvable:$true] %s387
          %390 = dma.hbm_to_vmem [thread:$0]  %s9, 16, %s388, [#allocation10]
        $region48: #{tpu_custom_call.1} parent=11 // pred_fallthru
          _
        // Predicated region
        $region49: #{tpu_custom_call.1} parent=11 // pred_check
          %p391 = pneg %p260
        $region50: #{tpu_custom_call.1} parent=11 // pred_check_branch
          %393 = sbr.rel (%p391) target = $region52
        $region51: #{tpu_custom_call.1} parent=11 // pred_region
          _
        $region52: #{tpu_custom_call.1} parent=11 // pred_fallthru
          _
        // Predicated region
        $region53: #{tpu_custom_call.1} parent=11 // pred_check
          %p394 = pneg %p281
        $region54: #{tpu_custom_call.1} parent=11 // pred_check_branch
          %396 = sbr.rel (%p394) target = $region56
        $region55: #{tpu_custom_call.1} parent=11 // pred_region
          _
        $region56: #{tpu_custom_call.1} parent=11 // pred_fallthru
          _
      $region12: #{tpu_custom_call.1} parent=5 // pred_fallthru
        _
      %p397 = scmp.lt.s32.totalorder %s24, 2
      // Predicated region
      $region57: #{tpu_custom_call.1} parent=5 // pred_check
        %p398 = pneg %p397
      $region58: #{tpu_custom_call.1} parent=5 // pred_check_branch
        %400 = sbr.rel (%p398) target = $region60
      $region59: #{tpu_custom_call.1} parent=5 // pred_region
        // Predicated region
        $region61: #{tpu_custom_call.1} parent=59 // pred_check
          %p401 = pneg %p44
        $region62: #{tpu_custom_call.1} parent=59 // pred_check_branch
          %403 = sbr.rel (%p401) target = $region64
        $region63: #{tpu_custom_call.1} parent=59 // pred_region
          %p404 = scmp.lt.s32.totalorder %s24, 1
          %s405 = scalar_select %p404, %s24, 1
          %s406 = smul.addr %s405, 8
          %s407 = scalar_lea.vmem %s0, %s406
        $region64: #{tpu_custom_call.1} parent=59 // pred_fallthru
          _
      $region60: #{tpu_custom_call.1} parent=5 // pred_fallthru
        _
      %p408 = scmp.le.s32.totalorder 1, %s24
      %p409 = scmp.lt.s32.totalorder %s24, 3
      %p410 = pnand %p408, %p409
      %p411 = pneg %p410
      // Predicated region
      $region65: #{tpu_custom_call.1} parent=5 // pred_check
        _
      $region66: #{tpu_custom_call.1} parent=5 // pred_check_branch
        %413 = sbr.rel (%p410) target = $region68
      $region67: #{tpu_custom_call.1} parent=5 // pred_region
        %s414 = ssub.s32 %s24, 1
        // Predicated region
        $region69: #{tpu_custom_call.1} parent=67 // pred_check
          %p415 = pneg %p155
        $region70: #{tpu_custom_call.1} parent=67 // pred_check_branch
          %417 = sbr.rel (%p415) target = $region72
        $region71: #{tpu_custom_call.1} parent=67 // pred_region
          %418 = dma.done [#allocation4], 16
        $region72: #{tpu_custom_call.1} parent=67 // pred_fallthru
          _
        // Predicated region
        $region73: #{tpu_custom_call.1} parent=67 // pred_check
          %p419 = pneg %p176
        $region74: #{tpu_custom_call.1} parent=67 // pred_check_branch
          %421 = sbr.rel (%p419) target = $region76
        $region75: #{tpu_custom_call.1} parent=67 // pred_region
          %422 = dma.done [#allocation7], 16
        $region76: #{tpu_custom_call.1} parent=67 // pred_fallthru
          _
        // Predicated region
        $region77: #{tpu_custom_call.1} parent=67 // pred_check
          %p423 = pneg %p197
        $region78: #{tpu_custom_call.1} parent=67 // pred_check_branch
          %425 = sbr.rel (%p423) target = $region80
        $region79: #{tpu_custom_call.1} parent=67 // pred_region
          %426 = dma.done [#allocation7], 16
        $region80: #{tpu_custom_call.1} parent=67 // pred_fallthru
          _
        // Predicated region
        $region81: #{tpu_custom_call.1} parent=67 // pred_check
          %p427 = pneg %p218
        $region82: #{tpu_custom_call.1} parent=67 // pred_check_branch
          %429 = sbr.rel (%p427) target = $region84
        $region83: #{tpu_custom_call.1} parent=67 // pred_region
          %430 = dma.done [#allocation10], 256
        $region84: #{tpu_custom_call.1} parent=67 // pred_fallthru
          _
        // Predicated region
        $region85: #{tpu_custom_call.1} parent=67 // pred_check
          %p431 = pneg %p239
        $region86: #{tpu_custom_call.1} parent=67 // pred_check_branch
          %433 = sbr.rel (%p431) target = $region88
        $region87: #{tpu_custom_call.1} parent=67 // pred_region
          %434 = dma.done [#allocation10], 16
        $region88: #{tpu_custom_call.1} parent=67 // pred_fallthru
          _
        %p435 = scmp.lt.s32.totalorder %s29, 1
        %s436 = scalar_select %p435, %s29, 1
        %s437 = smul.addr %s436, 8
        %s438 = scalar_lea.vmem %s0, %s437
        %p439 = pneg %p50
        %p440 = pneg %p47
        %p441 = pneg %p71
        %p442 = pneg %p68
        %p443 = pneg %p92
        %p444 = pneg %p89
        %p445 = pneg %p113
        %p446 = pneg %p110
        %p447 = pneg %p134
        %p448 = pneg %p131
        %p449 = pneg %p155
        %p450 = pneg %p152
        %p451 = pneg %p176
        %p452 = pneg %p173
        %p453 = pneg %p197
        %p454 = pneg %p194
        %p455 = pneg %p218
        %p456 = pneg %p215
        %p457 = pneg %p239
        %p458 = pneg %p236
        %p459 = pneg %p260
        %p460 = pneg %p257
        %p461 = pneg %p281
        %p462 = pneg %p278
        %p463 = pneg %p307
        %p464 = pneg %p304
        %s465 = sand.u32 %s294, 1
        %s466 = scalar_lea.sflag [#allocation5], %s465
        %s467 = sand.u32 %s294, 1
        %s468 = smul.addr %s467, 8
        %s469 = scalar_lea.vmem [#allocation12], %s468
        %p470 = scmp.lt.s32.totalorder %s29, 1
        %s471 = scalar_select %p470, %s29, 1
        %s472 = smul.addr %s471, 8
        %s473 = scalar_lea.vmem %s0, %s472
        %v475 = vld [vmem:[%s473] sm:$0xff]
        %vm476 = vcmask 261120
        %v477 = vsel %vm476, %v475, 0.0
        %478 = vadd.xlane.f32.xlu0 %v477
        %v479 = vpop.xlane.xlu0 %478
        %v480 = vrcp.pop 32.0
        %v481 = vmul.f32 %v479, %v480
        %v482 = vsub.f32 %v475, %v481
        %v483 = vmul.f32 %v482, %v482
        %v484 = vsel %vm476, %v483, 0.0
        %485 = vadd.xlane.f32.xlu0 %v484
        %v486 = vpop.xlane.xlu0 %485
        %v487 = vmul.f32 %v486, %v480
        %v488 = vadd.f32 %v487, 1e-05
        %v489 = vrsqrt.pop %v488
        %v490 = vmul.f32 %v482, %v489
        %v491 = vld [vmem:[%s1] sm:$0x1]
        %v493 = vlaneseq
        %v494 = vshrl.u32 %v493, 7
        %v495 = vsub.s32 0, %v494
        %v496 = vrot.slane %v491, %v495
        %v498 = vmul.f32 %v490, %v496
        %v499 = vld [vmem:[%s2] sm:$0x1]
        %v501 = vlaneseq
        %v502 = vshrl.u32 %v501, 7
        %v503 = vsub.s32 0, %v502
        %v504 = vrot.slane %v499, %v503
        %v506 = vadd.f32 %v498, %v504
        %v507 = vpack.c.bf16 %v506, %v506
        %v508 = vld [vmem:[%s3] sm:$0xf]
        %v509 = vld [vmem:[%s3 + $0x4] sm:$0xf]
        %v510 = vld [vmem:[%s3 + $0x8] sm:$0xf]
        %v511 = vld [vmem:[%s3 + $0xc] sm:$0xf]
        %v516 = vunpack.c.l.b16 %v508
        %v517 = vunpack.c.l.b16 %v509
        %v518 = vunpack.c.l.b16 %v510
        %v519 = vunpack.c.l.b16 %v511
        %v520 = vpack.c.b16 %v517, %v516
        %v521 = vpack.c.b16 %v519, %v518
        %v525 = vsel %vm476, %v507, 0
        %527 = vmatprep.subr.bf16.mxu0 0
        %528 = vmatpush1.bf16.msra.mxu0 0
        %529 = vmatprep.subr.bf16.mxu0 0
        %530 = vmatpush1.bf16.msra.mxu0 0
        %531 = vmatprep.subr.bf16.mxu0 0
        %532 = vmatpush1.bf16.msra.mxu0 0
        %533 = vmatprep.subr.bf16.mxu0 0
        %534 = vmatpush1.bf16.msra.mxu0 0
        %535 = vmatprep.subr.bf16.mxu0 0
        %536 = vmatpush1.bf16.msra.mxu0 0
        %537 = vmatprep.subr.bf16.mxu0 0
        %538 = vmatpush1.bf16.msra.mxu0 0
        %539 = vmatprep.subr.bf16.mxu0 0
        %540 = vmatpush1.bf16.msra.mxu0 %v521
        %541 = vmatprep.subr.bf16.mxu0 0
        %542 = vmatpush1.bf16.msra.mxu0 %v520
        %543 = vmatprep.subr.bf16.mxu0 0
        %544 = vmatpush2.bf16.msra.mxu0 0
        %545 = vmatprep.subr.bf16.mxu0 0
        %546 = vmatpush2.bf16.msra.mxu0 0
        %547 = vmatprep.subr.bf16.mxu0 0
        %548 = vmatpush2.bf16.msra.mxu0 0
        %549 = vmatprep.subr.bf16.mxu0 0
        %550 = vmatpush2.bf16.msra.mxu0 0
        %551 = vmatprep.subr.bf16.mxu0 0
        %552 = vmatpush2.bf16.msra.mxu0 0
        %553 = vmatprep.subr.bf16.mxu0 0
        %554 = vmatpush2.bf16.msra.mxu0 0
        %555 = vmatprep.subr.bf16.mxu0 0
        %556 = vmatpush2.bf16.msra.mxu0 0
        %557 = vmatprep.subr.bf16.mxu0 0
        %558 = vmatpush2.bf16.msra.mxu0 0
        %559 = vmatprep.mubr.bf16.mxu0 0
        %560 = vmatmul.mubr.bf16.gmra.mxu0 %v525
        %v561 = vpop.f32.mrf.mxu0
        %v562 = vadd.f32 0.0, %v561
        %v563 = vpop.f32.mrf.mxu0
        %v564 = vpop.f32.mrf.mxu0
        %v565 = vpop.f32.mrf.mxu0
        %566 = vdwg.mxu0
        %v567 = vmul.f32 %v562, 0.17677669
        %v568 = vpack.c.bf16 %v567, %v567
        %v569 = vpack.c.bf16 %v562, %v562
        %571 = vrot.lane.b32.xlu0 %v569, 96
        %v572 = vpop.permute.xlu0 %571
        %vm573 = vcmask 31744
        %v575 = vsel %vm573, %v568, 0
        %v578 = vsel %vm573, %v572, 0
        %580 = vmatprep.subr.bf16.mxu0 0
        %581 = vmatpush1.bf16.xpose.msra.mxu0 0
        %582 = vmatprep.subr.bf16.mxu0 0
        %583 = vmatpush1.bf16.xpose.msra.mxu0 0
        %584 = vmatprep.subr.bf16.mxu0 0
        %585 = vmatpush1.bf16.xpose.msra.mxu0 0
        %586 = vmatprep.subr.bf16.mxu0 0
        %587 = vmatpush1.bf16.xpose.msra.mxu0 0
        %588 = vmatprep.subr.bf16.mxu0 0
        %589 = vmatpush1.bf16.xpose.msra.mxu0 0
        %590 = vmatprep.subr.bf16.mxu0 0
        %591 = vmatpush1.bf16.xpose.msra.mxu0 0
        %592 = vmatprep.subr.bf16.mxu0 0
        %593 = vmatpush1.bf16.xpose.msra.mxu0 0
        %594 = vmatprep.subr.bf16.mxu0 0
        %595 = vmatpush1.bf16.xpose.msra.mxu0 %v578
        %596 = vmatprep.subr.bf16.mxu0 0
        %597 = vmatpush2.bf16.xpose.msra.mxu0 0
        %598 = vmatprep.subr.bf16.mxu0 0
        %599 = vmatpush2.bf16.xpose.msra.mxu0 0
        %600 = vmatprep.subr.bf16.mxu0 0
        %601 = vmatpush2.bf16.xpose.msra.mxu0 0
        %602 = vmatprep.subr.bf16.mxu0 0
        %603 = vmatpush2.bf16.xpose.msra.mxu0 0
        %604 = vmatprep.subr.bf16.mxu0 0
        %605 = vmatpush2.bf16.xpose.msra.mxu0 0
        %606 = vmatprep.subr.bf16.mxu0 0
        %607 = vmatpush2.bf16.xpose.msra.mxu0 0
        %608 = vmatprep.subr.bf16.mxu0 0
        %609 = vmatpush2.bf16.xpose.msra.mxu0 0
        %610 = vmatprep.subr.bf16.mxu0 0
        %611 = vmatpush2.bf16.xpose.msra.mxu0 0
        %612 = vmatprep.mubr.bf16.mxu0 0
        %613 = vmatmul.mubr.bf16.gmra.mxu0 %v575
        %v614 = vpop.f32.mrf.mxu0
        %v615 = vadd.f32 0.0, %v614
        %v616 = vpop.f32.mrf.mxu0
        %v617 = vpop.f32.mrf.mxu0
        %v618 = vpop.f32.mrf.mxu0
        %619 = vdwg.mxu0
        %vm620 = vcmask 64512
        %v621 = vsel %vm620, %v615, -inf
        %622 = vmax.xlane.f32.xlu0 %v621
        %v623 = vpop.xlane.xlu0 %622
        %v624 = vsub.f32 %v615, %v623
        %v625 = vmul.f32 %v624, 1.442695
        %v626 = vpow.pop %v625
        %v627 = vsel %vm620, %v626, 0.0
        %628 = vadd.xlane.f32.xlu0 %v627
        %v629 = vpop.xlane.xlu0 %628
        %v630 = vrcp.pop %v629
        %v631 = vmul.f32 %v626, %v630
        %v632 = vpack.c.bf16 %v631, %v631
        %633 = vrot.lane.b32.xlu0 %v569, 64
        %v634 = vpop.permute.xlu0 %633
        %v636 = vsel %vm620, %v632, 0
        %vm638 = vcmask 1043456
        %v640 = vsel %vm638, %v634, 0
        %642 = vmatprep.subr.bf16.mxu0 0
        %643 = vmatpush1.bf16.msra.mxu0 0
        %644 = vmatprep.subr.bf16.mxu0 0
        %645 = vmatpush1.bf16.msra.mxu0 0
        %646 = vmatprep.subr.bf16.mxu0 0
        %647 = vmatpush1.bf16.msra.mxu0 0
        %648 = vmatprep.subr.bf16.mxu0 0
        %649 = vmatpush1.bf16.msra.mxu0 0
        %650 = vmatprep.subr.bf16.mxu0 0
        %651 = vmatpush1.bf16.msra.mxu0 0
        %652 = vmatprep.subr.bf16.mxu0 0
        %653 = vmatpush1.bf16.msra.mxu0 0
        %654 = vmatprep.subr.bf16.mxu0 0
        %655 = vmatpush1.bf16.msra.mxu0 0
        %656 = vmatprep.subr.bf16.mxu0 0
        %657 = vmatpush1.bf16.msra.mxu0 %v640
        %658 = vmatprep.subr.bf16.mxu0 0
        %659 = vmatpush2.bf16.msra.mxu0 0
        %660 = vmatprep.subr.bf16.mxu0 0
        %661 = vmatpush2.bf16.msra.mxu0 0
        %662 = vmatprep.subr.bf16.mxu0 0
        %663 = vmatpush2.bf16.msra.mxu0 0
        %664 = vmatprep.subr.bf16.mxu0 0
        %665 = vmatpush2.bf16.msra.mxu0 0
        %666 = vmatprep.subr.bf16.mxu0 0
        %667 = vmatpush2.bf16.msra.mxu0 0
        %668 = vmatprep.subr.bf16.mxu0 0
        %669 = vmatpush2.bf16.msra.mxu0 0
        %670 = vmatprep.subr.bf16.mxu0 0
        %671 = vmatpush2.bf16.msra.mxu0 0
        %672 = vmatprep.subr.bf16.mxu0 0
        %673 = vmatpush2.bf16.msra.mxu0 0
        %674 = vmatprep.mubr.bf16.mxu0 0
        %675 = vmatmul.mubr.bf16.gmra.mxu0 %v636
        %v676 = vpop.f32.mrf.mxu0
        %v677 = vadd.f32 0.0, %v676
        %v678 = vpop.f32.mrf.mxu0
        %v679 = vpop.f32.mrf.mxu0
        %v680 = vpop.f32.mrf.mxu0
        %681 = vdwg.mxu0
        %682 = vst.msk [vmem:[#allocation2] sm:$0xff] %vm573, %v677
        %684 = vrot.lane.b32.xlu0 %v568, 124
        %v685 = vpop.permute.xlu0 %684
        %686 = vrot.lane.b32.xlu0 %v569, 92
        %v687 = vpop.permute.xlu0 %686
        %v689 = vsel %vm573, %v685, 0
        %v692 = vsel %vm573, %v687, 0
        %694 = vmatprep.subr.bf16.mxu0 0
        %695 = vmatpush1.bf16.xpose.msra.mxu0 0
        %696 = vmatprep.subr.bf16.mxu0 0
        %697 = vmatpush1.bf16.xpose.msra.mxu0 0
        %698 = vmatprep.subr.bf16.mxu0 0
        %699 = vmatpush1.bf16.xpose.msra.mxu0 0
        %700 = vmatprep.subr.bf16.mxu0 0
        %701 = vmatpush1.bf16.xpose.msra.mxu0 0
        %702 = vmatprep.subr.bf16.mxu0 0
        %703 = vmatpush1.bf16.xpose.msra.mxu0 0
        %704 = vmatprep.subr.bf16.mxu0 0
        %705 = vmatpush1.bf16.xpose.msra.mxu0 0
        %706 = vmatprep.subr.bf16.mxu0 0
        %707 = vmatpush1.bf16.xpose.msra.mxu0 0
        %708 = vmatprep.subr.bf16.mxu0 0
        %709 = vmatpush1.bf16.xpose.msra.mxu0 %v692
        %710 = vmatprep.subr.bf16.mxu0 0
        %711 = vmatpush2.bf16.xpose.msra.mxu0 0
        %712 = vmatprep.subr.bf16.mxu0 0
        %713 = vmatpush2.bf16.xpose.msra.mxu0 0
        %714 = vmatprep.subr.bf16.mxu0 0
        %715 = vmatpush2.bf16.xpose.msra.mxu0 0
        %716 = vmatprep.subr.bf16.mxu0 0
        %717 = vmatpush2.bf16.xpose.msra.mxu0 0
        %718 = vmatprep.subr.bf16.mxu0 0
        %719 = vmatpush2.bf16.xpose.msra.mxu0 0
        %720 = vmatprep.subr.bf16.mxu0 0
        %721 = vmatpush2.bf16.xpose.msra.mxu0 0
        %722 = vmatprep.subr.bf16.mxu0 0
        %723 = vmatpush2.bf16.xpose.msra.mxu0 0
        %724 = vmatprep.subr.bf16.mxu0 0
        %725 = vmatpush2.bf16.xpose.msra.mxu0 0
        %726 = vmatprep.mubr.bf16.mxu0 0
        %727 = vmatmul.mubr.bf16.gmra.mxu0 %v689
        %v728 = vpop.f32.mrf.mxu0
        %v729 = vadd.f32 0.0, %v728
        %v730 = vpop.f32.mrf.mxu0
        %v731 = vpop.f32.mrf.mxu0
        %v732 = vpop.f32.mrf.mxu0
        %733 = vdwg.mxu0
        %v734 = vsel %vm620, %v729, -inf
        %735 = vmax.xlane.f32.xlu0 %v734
        %v736 = vpop.xlane.xlu0 %735
        %v737 = vsub.f32 %v729, %v736
        %v738 = vmul.f32 %v737, 1.442695
        %v739 = vpow.pop %v738
        %v740 = vsel %vm620, %v739, 0.0
        %741 = vadd.xlane.f32.xlu0 %v740
        %v742 = vpop.xlane.xlu0 %741
        %v743 = vrcp.pop %v742
        %v744 = vmul.f32 %v739, %v743
        %v745 = vpack.c.bf16 %v744, %v744
        %746 = vrot.lane.b32.xlu0 %v569, 60
        %v747 = vpop.permute.xlu0 %746
        %v749 = vsel %vm620, %v745, 0
        %v752 = vsel %vm638, %v747, 0
        %754 = vmatprep.subr.bf16.mxu0 0
        %755 = vmatpush1.bf16.msra.mxu0 0
        %756 = vmatprep.subr.bf16.mxu0 0
        %757 = vmatpush1.bf16.msra.mxu0 0
        %758 = vmatprep.subr.bf16.mxu0 0
        %759 = vmatpush1.bf16.msra.mxu0 0
        %760 = vmatprep.subr.bf16.mxu0 0
        %761 = vmatpush1.bf16.msra.mxu0 0
        %762 = vmatprep.subr.bf16.mxu0 0
        %763 = vmatpush1.bf16.msra.mxu0 0
        %764 = vmatprep.subr.bf16.mxu0 0
        %765 = vmatpush1.bf16.msra.mxu0 0
        %766 = vmatprep.subr.bf16.mxu0 0
        %767 = vmatpush1.bf16.msra.mxu0 0
        %768 = vmatprep.subr.bf16.mxu0 0
        %769 = vmatpush1.bf16.msra.mxu0 %v752
        %770 = vmatprep.subr.bf16.mxu0 0
        %771 = vmatpush2.bf16.msra.mxu0 0
        %772 = vmatprep.subr.bf16.mxu0 0
        %773 = vmatpush2.bf16.msra.mxu0 0
        %774 = vmatprep.subr.bf16.mxu0 0
        %775 = vmatpush2.bf16.msra.mxu0 0
        %776 = vmatprep.subr.bf16.mxu0 0
        %777 = vmatpush2.bf16.msra.mxu0 0
        %778 = vmatprep.subr.bf16.mxu0 0
        %779 = vmatpush2.bf16.msra.mxu0 0
        %780 = vmatprep.subr.bf16.mxu0 0
        %781 = vmatpush2.bf16.msra.mxu0 0
        %782 = vmatprep.subr.bf16.mxu0 0
        %783 = vmatpush2.bf16.msra.mxu0 0
        %784 = vmatprep.subr.bf16.mxu0 0
        %785 = vmatpush2.bf16.msra.mxu0 0
        %786 = vmatprep.mubr.bf16.mxu0 0
        %787 = vmatmul.mubr.bf16.gmra.mxu0 %v749
        %v788 = vpop.f32.mrf.mxu0
        %v789 = vadd.f32 0.0, %v788
        %v790 = vpop.f32.mrf.mxu0
        %v791 = vpop.f32.mrf.mxu0
        %v792 = vpop.f32.mrf.mxu0
        %793 = vdwg.mxu0
        %795 = vrot.lane.b32.xlu0 %v789, 4
        %v796 = vpop.permute.xlu0 %795
        %vm798 = vcmask 64544
        %799 = vst.msk [vmem:[#allocation2] sm:$0xff] %vm798, %v796
        %800 = vrot.lane.b32.xlu0 %v568, 120
        %v801 = vpop.permute.xlu0 %800
        %802 = vrot.lane.b32.xlu0 %v569, 88
        %v803 = vpop.permute.xlu0 %802
        %v805 = vsel %vm573, %v801, 0
        %v808 = vsel %vm573, %v803, 0
        %810 = vmatprep.subr.bf16.mxu0 0
        %811 = vmatpush1.bf16.xpose.msra.mxu0 0
        %812 = vmatprep.subr.bf16.mxu0 0
        %813 = vmatpush1.bf16.xpose.msra.mxu0 0
        %814 = vmatprep.subr.bf16.mxu0 0
        %815 = vmatpush1.bf16.xpose.msra.mxu0 0
        %816 = vmatprep.subr.bf16.mxu0 0
        %817 = vmatpush1.bf16.xpose.msra.mxu0 0
        %818 = vmatprep.subr.bf16.mxu0 0
        %819 = vmatpush1.bf16.xpose.msra.mxu0 0
        %820 = vmatprep.subr.bf16.mxu0 0
        %821 = vmatpush1.bf16.xpose.msra.mxu0 0
        %822 = vmatprep.subr.bf16.mxu0 0
        %823 = vmatpush1.bf16.xpose.msra.mxu0 0
        %824 = vmatprep.subr.bf16.mxu0 0
        %825 = vmatpush1.bf16.xpose.msra.mxu0 %v808
        %826 = vmatprep.subr.bf16.mxu0 0
        %827 = vmatpush2.bf16.xpose.msra.mxu0 0
        %828 = vmatprep.subr.bf16.mxu0 0
        %829 = vmatpush2.bf16.xpose.msra.mxu0 0
        %830 = vmatprep.subr.bf16.mxu0 0
        %831 = vmatpush2.bf16.xpose.msra.mxu0 0
        %832 = vmatprep.subr.bf16.mxu0 0
        %833 = vmatpush2.bf16.xpose.msra.mxu0 0
        %834 = vmatprep.subr.bf16.mxu0 0
        %835 = vmatpush2.bf16.xpose.msra.mxu0 0
        %836 = vmatprep.subr.bf16.mxu0 0
        %837 = vmatpush2.bf16.xpose.msra.mxu0 0
        %838 = vmatprep.subr.bf16.mxu0 0
        %839 = vmatpush2.bf16.xpose.msra.mxu0 0
        %840 = vmatprep.subr.bf16.mxu0 0
        %841 = vmatpush2.bf16.xpose.msra.mxu0 0
        %842 = vmatprep.mubr.bf16.mxu0 0
        %843 = vmatmul.mubr.bf16.gmra.mxu0 %v805
        %v844 = vpop.f32.mrf.mxu0
        %v845 = vadd.f32 0.0, %v844
        %v846 = vpop.f32.mrf.mxu0
        %v847 = vpop.f32.mrf.mxu0
        %v848 = vpop.f32.mrf.mxu0
        %849 = vdwg.mxu0
        %v850 = vsel %vm620, %v845, -inf
        %851 = vmax.xlane.f32.xlu0 %v850
        %v852 = vpop.xlane.xlu0 %851
        %v853 = vsub.f32 %v845, %v852
        %v854 = vmul.f32 %v853, 1.442695
        %v855 = vpow.pop %v854
        %v856 = vsel %vm620, %v855, 0.0
        %857 = vadd.xlane.f32.xlu0 %v856
        %v858 = vpop.xlane.xlu0 %857
        %v859 = vrcp.pop %v858
        %v860 = vmul.f32 %v855, %v859
        %v861 = vpack.c.bf16 %v860, %v860
        %862 = vrot.lane.b32.xlu0 %v569, 56
        %v863 = vpop.permute.xlu0 %862
        %v865 = vsel %vm620, %v861, 0
        %v868 = vsel %vm638, %v863, 0
        %870 = vmatprep.subr.bf16.mxu0 0
        %871 = vmatpush1.bf16.msra.mxu0 0
        %872 = vmatprep.subr.bf16.mxu0 0
        %873 = vmatpush1.bf16.msra.mxu0 0
        %874 = vmatprep.subr.bf16.mxu0 0
        %875 = vmatpush1.bf16.msra.mxu0 0
        %876 = vmatprep.subr.bf16.mxu0 0
        %877 = vmatpush1.bf16.msra.mxu0 0
        %878 = vmatprep.subr.bf16.mxu0 0
        %879 = vmatpush1.bf16.msra.mxu0 0
        %880 = vmatprep.subr.bf16.mxu0 0
        %881 = vmatpush1.bf16.msra.mxu0 0
        %882 = vmatprep.subr.bf16.mxu0 0
        %883 = vmatpush1.bf16.msra.mxu0 0
        %884 = vmatprep.subr.bf16.mxu0 0
        %885 = vmatpush1.bf16.msra.mxu0 %v868
        %886 = vmatprep.subr.bf16.mxu0 0
        %887 = vmatpush2.bf16.msra.mxu0 0
        %888 = vmatprep.subr.bf16.mxu0 0
        %889 = vmatpush2.bf16.msra.mxu0 0
        %890 = vmatprep.subr.bf16.mxu0 0
        %891 = vmatpush2.bf16.msra.mxu0 0
        %892 = vmatprep.subr.bf16.mxu0 0
        %893 = vmatpush2.bf16.msra.mxu0 0
        %894 = vmatprep.subr.bf16.mxu0 0
        %895 = vmatpush2.bf16.msra.mxu0 0
        %896 = vmatprep.subr.bf16.mxu0 0
        %897 = vmatpush2.bf16.msra.mxu0 0
        %898 = vmatprep.subr.bf16.mxu0 0
        %899 = vmatpush2.bf16.msra.mxu0 0
        %900 = vmatprep.subr.bf16.mxu0 0
        %901 = vmatpush2.bf16.msra.mxu0 0
        %902 = vmatprep.mubr.bf16.mxu0 0
        %903 = vmatmul.mubr.bf16.gmra.mxu0 %v865
        %v904 = vpop.f32.mrf.mxu0
        %v905 = vadd.f32 0.0, %v904
        %v906 = vpop.f32.mrf.mxu0
        %v907 = vpop.f32.mrf.mxu0
        %v908 = vpop.f32.mrf.mxu0
        %909 = vdwg.mxu0
        %911 = vrot.lane.b32.xlu0 %v905, 8
        %v912 = vpop.permute.xlu0 %911
        %vm914 = vcmask 97344
        %915 = vst.msk [vmem:[#allocation2] sm:$0xff] %vm914, %v912
        %916 = vrot.lane.b32.xlu0 %v568, 116
        %v917 = vpop.permute.xlu0 %916
        %918 = vrot.lane.b32.xlu0 %v569, 84
        %v919 = vpop.permute.xlu0 %918
        %v921 = vsel %vm573, %v917, 0
        %v924 = vsel %vm573, %v919, 0
        %926 = vmatprep.subr.bf16.mxu0 0
        %927 = vmatpush1.bf16.xpose.msra.mxu0 0
        %928 = vmatprep.subr.bf16.mxu0 0
        %929 = vmatpush1.bf16.xpose.msra.mxu0 0
        %930 = vmatprep.subr.bf16.mxu0 0
        %931 = vmatpush1.bf16.xpose.msra.mxu0 0
        %932 = vmatprep.subr.bf16.mxu0 0
        %933 = vmatpush1.bf16.xpose.msra.mxu0 0
        %934 = vmatprep.subr.bf16.mxu0 0
        %935 = vmatpush1.bf16.xpose.msra.mxu0 0
        %936 = vmatprep.subr.bf16.mxu0 0
        %937 = vmatpush1.bf16.xpose.msra.mxu0 0
        %938 = vmatprep.subr.bf16.mxu0 0
        %939 = vmatpush1.bf16.xpose.msra.mxu0 0
        %940 = vmatprep.subr.bf16.mxu0 0
        %941 = vmatpush1.bf16.xpose.msra.mxu0 %v924
        %942 = vmatprep.subr.bf16.mxu0 0
        %943 = vmatpush2.bf16.xpose.msra.mxu0 0
        %944 = vmatprep.subr.bf16.mxu0 0
        %945 = vmatpush2.bf16.xpose.msra.mxu0 0
        %946 = vmatprep.subr.bf16.mxu0 0
        %947 = vmatpush2.bf16.xpose.msra.mxu0 0
        %948 = vmatprep.subr.bf16.mxu0 0
        %949 = vmatpush2.bf16.xpose.msra.mxu0 0
        %950 = vmatprep.subr.bf16.mxu0 0
        %951 = vmatpush2.bf16.xpose.msra.mxu0 0
        %952 = vmatprep.subr.bf16.mxu0 0
        %953 = vmatpush2.bf16.xpose.msra.mxu0 0
        %954 = vmatprep.subr.bf16.mxu0 0
        %955 = vmatpush2.bf16.xpose.msra.mxu0 0
        %956 = vmatprep.subr.bf16.mxu0 0
        %957 = vmatpush2.bf16.xpose.msra.mxu0 0
        %958 = vmatprep.mubr.bf16.mxu0 0
        %959 = vmatmul.mubr.bf16.gmra.mxu0 %v921
        %v960 = vpop.f32.mrf.mxu0
        %v961 = vadd.f32 0.0, %v960
        %v962 = vpop.f32.mrf.mxu0
        %v963 = vpop.f32.mrf.mxu0
        %v964 = vpop.f32.mrf.mxu0
        %965 = vdwg.mxu0
        %v966 = vsel %vm620, %v961, -inf
        %967 = vmax.xlane.f32.xlu0 %v966
        %v968 = vpop.xlane.xlu0 %967
        %v969 = vsub.f32 %v961, %v968
        %v970 = vmul.f32 %v969, 1.442695
        %v971 = vpow.pop %v970
        %v972 = vsel %vm620, %v971, 0.0
        %973 = vadd.xlane.f32.xlu0 %v972
        %v974 = vpop.xlane.xlu0 %973
        %v975 = vrcp.pop %v974
        %v976 = vmul.f32 %v971, %v975
        %v977 = vpack.c.bf16 %v976, %v976
        %978 = vrot.lane.b32.xlu0 %v569, 52
        %v979 = vpop.permute.xlu0 %978
        %v981 = vsel %vm620, %v977, 0
        %v984 = vsel %vm638, %v979, 0
        %986 = vmatprep.subr.bf16.mxu0 0
        %987 = vmatpush1.bf16.msra.mxu0 0
        %988 = vmatprep.subr.bf16.mxu0 0
        %989 = vmatpush1.bf16.msra.mxu0 0
        %990 = vmatprep.subr.bf16.mxu0 0
        %991 = vmatpush1.bf16.msra.mxu0 0
        %992 = vmatprep.subr.bf16.mxu0 0
        %993 = vmatpush1.bf16.msra.mxu0 0
        %994 = vmatprep.subr.bf16.mxu0 0
        %995 = vmatpush1.bf16.msra.mxu0 0
        %996 = vmatprep.subr.bf16.mxu0 0
        %997 = vmatpush1.bf16.msra.mxu0 0
        %998 = vmatprep.subr.bf16.mxu0 0
        %999 = vmatpush1.bf16.msra.mxu0 0
        %1000 = vmatprep.subr.bf16.mxu0 0
        %1001 = vmatpush1.bf16.msra.mxu0 %v984
        %1002 = vmatprep.subr.bf16.mxu0 0
        %1003 = vmatpush2.bf16.msra.mxu0 0
        %1004 = vmatprep.subr.bf16.mxu0 0
        %1005 = vmatpush2.bf16.msra.mxu0 0
        %1006 = vmatprep.subr.bf16.mxu0 0
        %1007 = vmatpush2.bf16.msra.mxu0 0
        %1008 = vmatprep.subr.bf16.mxu0 0
        %1009 = vmatpush2.bf16.msra.mxu0 0
        %1010 = vmatprep.subr.bf16.mxu0 0
        %1011 = vmatpush2.bf16.msra.mxu0 0
        %1012 = vmatprep.subr.bf16.mxu0 0
        %1013 = vmatpush2.bf16.msra.mxu0 0
        %1014 = vmatprep.subr.bf16.mxu0 0
        %1015 = vmatpush2.bf16.msra.mxu0 0
        %1016 = vmatprep.subr.bf16.mxu0 0
        %1017 = vmatpush2.bf16.msra.mxu0 0
        %1018 = vmatprep.mubr.bf16.mxu0 0
        %1019 = vmatmul.mubr.bf16.gmra.mxu0 %v981
        %v1020 = vpop.f32.mrf.mxu0
        %v1021 = vadd.f32 0.0, %v1020
        %v1022 = vpop.f32.mrf.mxu0
        %v1023 = vpop.f32.mrf.mxu0
        %v1024 = vpop.f32.mrf.mxu0
        %1025 = vdwg.mxu0
        %1027 = vrot.lane.b32.xlu0 %v1021, 12
        %v1028 = vpop.permute.xlu0 %1027
        %vm1030 = vcmask 130144
        %1031 = vst.msk [vmem:[#allocation2] sm:$0xff] %vm1030, %v1028
        %1032 = vrot.lane.b32.xlu0 %v568, 112
        %v1033 = vpop.permute.xlu0 %1032
        %1034 = vrot.lane.b32.xlu0 %v569, 80
        %v1035 = vpop.permute.xlu0 %1034
        %v1037 = vsel %vm573, %v1033, 0
        %v1040 = vsel %vm573, %v1035, 0
        %1042 = vmatprep.subr.bf16.mxu0 0
        %1043 = vmatpush1.bf16.xpose.msra.mxu0 0
        %1044 = vmatprep.subr.bf16.mxu0 0
        %1045 = vmatpush1.bf16.xpose.msra.mxu0 0
        %1046 = vmatprep.subr.bf16.mxu0 0
        %1047 = vmatpush1.bf16.xpose.msra.mxu0 0
        %1048 = vmatprep.subr.bf16.mxu0 0
        %1049 = vmatpush1.bf16.xpose.msra.mxu0 0
        %1050 = vmatprep.subr.bf16.mxu0 0
        %1051 = vmatpush1.bf16.xpose.msra.mxu0 0
        %1052 = vmatprep.subr.bf16.mxu0 0
        %1053 = vmatpush1.bf16.xpose.msra.mxu0 0
        %1054 = vmatprep.subr.bf16.mxu0 0
        %1055 = vmatpush1.bf16.xpose.msra.mxu0 0
        %1056 = vmatprep.subr.bf16.mxu0 0
        %1057 = vmatpush1.bf16.xpose.msra.mxu0 %v1040
        %1058 = vmatprep.subr.bf16.mxu0 0
        %1059 = vmatpush2.bf16.xpose.msra.mxu0 0
        %1060 = vmatprep.subr.bf16.mxu0 0
        %1061 = vmatpush2.bf16.xpose.msra.mxu0 0
        %1062 = vmatprep.subr.bf16.mxu0 0
        %1063 = vmatpush2.bf16.xpose.msra.mxu0 0
        %1064 = vmatprep.subr.bf16.mxu0 0
        %1065 = vmatpush2.bf16.xpose.msra.mxu0 0
        %1066 = vmatprep.subr.bf16.mxu0 0
        %1067 = vmatpush2.bf16.xpose.msra.mxu0 0
        %1068 = vmatprep.subr.bf16.mxu0 0
        %1069 = vmatpush2.bf16.xpose.msra.mxu0 0
        %1070 = vmatprep.subr.bf16.mxu0 0
        %1071 = vmatpush2.bf16.xpose.msra.mxu0 0
        %1072 = vmatprep.subr.bf16.mxu0 0
        %1073 = vmatpush2.bf16.xpose.msra.mxu0 0
        %1074 = vmatprep.mubr.bf16.mxu0 0
        %1075 = vmatmul.mubr.bf16.gmra.mxu0 %v1037
        %v1076 = vpop.f32.mrf.mxu0
        %v1077 = vadd.f32 0.0, %v1076
        %v1078 = vpop.f32.mrf.mxu0
        %v1079 = vpop.f32.mrf.mxu0
        %v1080 = vpop.f32.mrf.mxu0
        %1081 = vdwg.mxu0
        %v1082 = vsel %vm620, %v1077, -inf
        %1083 = vmax.xlane.f32.xlu0 %v1082
        %v1084 = vpop.xlane.xlu0 %1083
        %v1085 = vsub.f32 %v1077, %v1084
        %v1086 = vmul.f32 %v1085, 1.442695
        %v1087 = vpow.pop %v1086
        %v1088 = vsel %vm620, %v1087, 0.0
        %1089 = vadd.xlane.f32.xlu0 %v1088
        %v1090 = vpop.xlane.xlu0 %1089
        %v1091 = vrcp.pop %v1090
        %v1092 = vmul.f32 %v1087, %v1091
        %v1093 = vpack.c.bf16 %v1092, %v1092
        %1094 = vrot.lane.b32.xlu0 %v569, 48
        %v1095 = vpop.permute.xlu0 %1094
        %v1097 = vsel %vm620, %v1093, 0
        %v1100 = vsel %vm638, %v1095, 0
        %1102 = vmatprep.subr.bf16.mxu0 0
        %1103 = vmatpush1.bf16.msra.mxu0 0
        %1104 = vmatprep.subr.bf16.mxu0 0
        %1105 = vmatpush1.bf16.msra.mxu0 0
        %1106 = vmatprep.subr.bf16.mxu0 0
        %1107 = vmatpush1.bf16.msra.mxu0 0
        %1108 = vmatprep.subr.bf16.mxu0 0
        %1109 = vmatpush1.bf16.msra.mxu0 0
        %1110 = vmatprep.subr.bf16.mxu0 0
        %1111 = vmatpush1.bf16.msra.mxu0 0
        %1112 = vmatprep.subr.bf16.mxu0 0
        %1113 = vmatpush1.bf16.msra.mxu0 0
        %1114 = vmatprep.subr.bf16.mxu0 0
        %1115 = vmatpush1.bf16.msra.mxu0 0
        %1116 = vmatprep.subr.bf16.mxu0 0
        %1117 = vmatpush1.bf16.msra.mxu0 %v1100
        %1118 = vmatprep.subr.bf16.mxu0 0
        %1119 = vmatpush2.bf16.msra.mxu0 0
        %1120 = vmatprep.subr.bf16.mxu0 0
        %1121 = vmatpush2.bf16.msra.mxu0 0
        %1122 = vmatprep.subr.bf16.mxu0 0
        %1123 = vmatpush2.bf16.msra.mxu0 0
        %1124 = vmatprep.subr.bf16.mxu0 0
        %1125 = vmatpush2.bf16.msra.mxu0 0
        %1126 = vmatprep.subr.bf16.mxu0 0
        %1127 = vmatpush2.bf16.msra.mxu0 0
        %1128 = vmatprep.subr.bf16.mxu0 0
        %1129 = vmatpush2.bf16.msra.mxu0 0
        %1130 = vmatprep.subr.bf16.mxu0 0
        %1131 = vmatpush2.bf16.msra.mxu0 0
        %1132 = vmatprep.subr.bf16.mxu0 0
        %1133 = vmatpush2.bf16.msra.mxu0 0
        %1134 = vmatprep.mubr.bf16.mxu0 0
        %1135 = vmatmul.mubr.bf16.gmra.mxu0 %v1097
        %v1136 = vpop.f32.mrf.mxu0
        %v1137 = vadd.f32 0.0, %v1136
        %v1138 = vpop.f32.mrf.mxu0
        %v1139 = vpop.f32.mrf.mxu0
        %v1140 = vpop.f32.mrf.mxu0
        %1141 = vdwg.mxu0
        %1143 = vrot.lane.b32.xlu0 %v1137, 16
        %v1144 = vpop.permute.xlu0 %1143
        %vm1146 = vcmask 162944
        %1147 = vst.msk [vmem:[#allocation2] sm:$0xff] %vm1146, %v1144
        %1148 = vrot.lane.b32.xlu0 %v568, 108
        %v1149 = vpop.permute.xlu0 %1148
        %1150 = vrot.lane.b32.xlu0 %v569, 76
        %v1151 = vpop.permute.xlu0 %1150
        %v1153 = vsel %vm573, %v1149, 0
        %v1156 = vsel %vm573, %v1151, 0
        %1158 = vmatprep.subr.bf16.mxu0 0
        %1159 = vmatpush1.bf16.xpose.msra.mxu0 0
        %1160 = vmatprep.subr.bf16.mxu0 0
        %1161 = vmatpush1.bf16.xpose.msra.mxu0 0
        %1162 = vmatprep.subr.bf16.mxu0 0
        %1163 = vmatpush1.bf16.xpose.msra.mxu0 0
        %1164 = vmatprep.subr.bf16.mxu0 0
        %1165 = vmatpush1.bf16.xpose.msra.mxu0 0
        %1166 = vmatprep.subr.bf16.mxu0 0
        %1167 = vmatpush1.bf16.xpose.msra.mxu0 0
        %1168 = vmatprep.subr.bf16.mxu0 0
        %1169 = vmatpush1.bf16.xpose.msra.mxu0 0
        %1170 = vmatprep.subr.bf16.mxu0 0
        %1171 = vmatpush1.bf16.xpose.msra.mxu0 0
        %1172 = vmatprep.subr.bf16.mxu0 0
        %1173 = vmatpush1.bf16.xpose.msra.mxu0 %v1156
        %1174 = vmatprep.subr.bf16.mxu0 0
        %1175 = vmatpush2.bf16.xpose.msra.mxu0 0
        %1176 = vmatprep.subr.bf16.mxu0 0
        %1177 = vmatpush2.bf16.xpose.msra.mxu0 0
        %1178 = vmatprep.subr.bf16.mxu0 0
        %1179 = vmatpush2.bf16.xpose.msra.mxu0 0
        %1180 = vmatprep.subr.bf16.mxu0 0
        %1181 = vmatpush2.bf16.xpose.msra.mxu0 0
        %1182 = vmatprep.subr.bf16.mxu0 0
        %1183 = vmatpush2.bf16.xpose.msra.mxu0 0
        %1184 = vmatprep.subr.bf16.mxu0 0
        %1185 = vmatpush2.bf16.xpose.msra.mxu0 0
        %1186 = vmatprep.subr.bf16.mxu0 0
        %1187 = vmatpush2.bf16.xpose.msra.mxu0 0
        %1188 = vmatprep.subr.bf16.mxu0 0
        %1189 = vmatpush2.bf16.xpose.msra.mxu0 0
        %1190 = vmatprep.mubr.bf16.mxu0 0
        %1191 = vmatmul.mubr.bf16.gmra.mxu0 %v1153
        %v1192 = vpop.f32.mrf.mxu0
        %v1193 = vadd.f32 0.0, %v1192
        %v1194 = vpop.f32.mrf.mxu0
        %v1195 = vpop.f32.mrf.mxu0
        %v1196 = vpop.f32.mrf.mxu0
        %1197 = vdwg.mxu0
        %v1198 = vsel %vm620, %v1193, -inf
        %1199 = vmax.xlane.f32.xlu0 %v1198
        %v1200 = vpop.xlane.xlu0 %1199
        %v1201 = vsub.f32 %v1193, %v1200
        %v1202 = vmul.f32 %v1201, 1.442695
        %v1203 = vpow.pop %v1202
        %v1204 = vsel %vm620, %v1203, 0.0
        %1205 = vadd.xlane.f32.xlu0 %v1204
        %v1206 = vpop.xlane.xlu0 %1205
        %v1207 = vrcp.pop %v1206
        %v1208 = vmul.f32 %v1203, %v1207
        %v1209 = vpack.c.bf16 %v1208, %v1208
        %1210 = vrot.lane.b32.xlu0 %v569, 44
        %v1211 = vpop.permute.xlu0 %1210
        %v1213 = vsel %vm620, %v1209, 0
        %v1216 = vsel %vm638, %v1211, 0
        %1218 = vmatprep.subr.bf16.mxu0 0
        %1219 = vmatpush1.bf16.msra.mxu0 0
        %1220 = vmatprep.subr.bf16.mxu0 0
        %1221 = vmatpush1.bf16.msra.mxu0 0
        %1222 = vmatprep.subr.bf16.mxu0 0
        %1223 = vmatpush1.bf16.msra.mxu0 0
        %1224 = vmatprep.subr.bf16.mxu0 0
        %1225 = vmatpush1.bf16.msra.mxu0 0
        %1226 = vmatprep.subr.bf16.mxu0 0
        %1227 = vmatpush1.bf16.msra.mxu0 0
        %1228 = vmatprep.subr.bf16.mxu0 0
        %1229 = vmatpush1.bf16.msra.mxu0 0
        %1230 = vmatprep.subr.bf16.mxu0 0
        %1231 = vmatpush1.bf16.msra.mxu0 0
        %1232 = vmatprep.subr.bf16.mxu0 0
        %1233 = vmatpush1.bf16.msra.mxu0 %v1216
        %1234 = vmatprep.subr.bf16.mxu0 0
        %1235 = vmatpush2.bf16.msra.mxu0 0
        %1236 = vmatprep.subr.bf16.mxu0 0
        %1237 = vmatpush2.bf16.msra.mxu0 0
        %1238 = vmatprep.subr.bf16.mxu0 0
        %1239 = vmatpush2.bf16.msra.mxu0 0
        %1240 = vmatprep.subr.bf16.mxu0 0
        %1241 = vmatpush2.bf16.msra.mxu0 0
        %1242 = vmatprep.subr.bf16.mxu0 0
        %1243 = vmatpush2.bf16.msra.mxu0 0
        %1244 = vmatprep.subr.bf16.mxu0 0
        %1245 = vmatpush2.bf16.msra.mxu0 0
        %1246 = vmatprep.subr.bf16.mxu0 0
        %1247 = vmatpush2.bf16.msra.mxu0 0
        %1248 = vmatprep.subr.bf16.mxu0 0
        %1249 = vmatpush2.bf16.msra.mxu0 0
        %1250 = vmatprep.mubr.bf16.mxu0 0
        %1251 = vmatmul.mubr.bf16.gmra.mxu0 %v1213
        %v1252 = vpop.f32.mrf.mxu0
        %v1253 = vadd.f32 0.0, %v1252
        %v1254 = vpop.f32.mrf.mxu0
        %v1255 = vpop.f32.mrf.mxu0
        %v1256 = vpop.f32.mrf.mxu0
        %1257 = vdwg.mxu0
        %1259 = vrot.lane.b32.xlu0 %v1253, 20
        %v1260 = vpop.permute.xlu0 %1259
        %vm1262 = vcmask 195744
        %1263 = vst.msk [vmem:[#allocation2] sm:$0xff] %vm1262, %v1260
        %1264 = vrot.lane.b32.xlu0 %v568, 104
        %v1265 = vpop.permute.xlu0 %1264
        %1266 = vrot.lane.b32.xlu0 %v569, 72
        %v1267 = vpop.permute.xlu0 %1266
        %v1269 = vsel %vm573, %v1265, 0
        %v1272 = vsel %vm573, %v1267, 0
        %1274 = vmatprep.subr.bf16.mxu0 0
        %1275 = vmatpush1.bf16.xpose.msra.mxu0 0
        %1276 = vmatprep.subr.bf16.mxu0 0
        %1277 = vmatpush1.bf16.xpose.msra.mxu0 0
        %1278 = vmatprep.subr.bf16.mxu0 0
        %1279 = vmatpush1.bf16.xpose.msra.mxu0 0
        %1280 = vmatprep.subr.bf16.mxu0 0
        %1281 = vmatpush1.bf16.xpose.msra.mxu0 0
        %1282 = vmatprep.subr.bf16.mxu0 0
        %1283 = vmatpush1.bf16.xpose.msra.mxu0 0
        %1284 = vmatprep.subr.bf16.mxu0 0
        %1285 = vmatpush1.bf16.xpose.msra.mxu0 0
        %1286 = vmatprep.subr.bf16.mxu0 0
        %1287 = vmatpush1.bf16.xpose.msra.mxu0 0
        %1288 = vmatprep.subr.bf16.mxu0 0
        %1289 = vmatpush1.bf16.xpose.msra.mxu0 %v1272
        %1290 = vmatprep.subr.bf16.mxu0 0
        %1291 = vmatpush2.bf16.xpose.msra.mxu0 0
        %1292 = vmatprep.subr.bf16.mxu0 0
        %1293 = vmatpush2.bf16.xpose.msra.mxu0 0
        %1294 = vmatprep.subr.bf16.mxu0 0
        %1295 = vmatpush2.bf16.xpose.msra.mxu0 0
        %1296 = vmatprep.subr.bf16.mxu0 0
        %1297 = vmatpush2.bf16.xpose.msra.mxu0 0
        %1298 = vmatprep.subr.bf16.mxu0 0
        %1299 = vmatpush2.bf16.xpose.msra.mxu0 0
        %1300 = vmatprep.subr.bf16.mxu0 0
        %1301 = vmatpush2.bf16.xpose.msra.mxu0 0
        %1302 = vmatprep.subr.bf16.mxu0 0
        %1303 = vmatpush2.bf16.xpose.msra.mxu0 0
        %1304 = vmatprep.subr.bf16.mxu0 0
        %1305 = vmatpush2.bf16.xpose.msra.mxu0 0
        %1306 = vmatprep.mubr.bf16.mxu0 0
        %1307 = vmatmul.mubr.bf16.gmra.mxu0 %v1269
        %v1308 = vpop.f32.mrf.mxu0
        %v1309 = vadd.f32 0.0, %v1308
        %v1310 = vpop.f32.mrf.mxu0
        %v1311 = vpop.f32.mrf.mxu0
        %v1312 = vpop.f32.mrf.mxu0
        %1313 = vdwg.mxu0
        %v1314 = vsel %vm620, %v1309, -inf
        %1315 = vmax.xlane.f32.xlu0 %v1314
        %v1316 = vpop.xlane.xlu0 %1315
        %v1317 = vsub.f32 %v1309, %v1316
        %v1318 = vmul.f32 %v1317, 1.442695
        %v1319 = vpow.pop %v1318
        %v1320 = vsel %vm620, %v1319, 0.0
        %1321 = vadd.xlane.f32.xlu0 %v1320
        %v1322 = vpop.xlane.xlu0 %1321
        %v1323 = vrcp.pop %v1322
        %v1324 = vmul.f32 %v1319, %v1323
        %v1325 = vpack.c.bf16 %v1324, %v1324
        %1326 = vrot.lane.b32.xlu0 %v569, 40
        %v1327 = vpop.permute.xlu0 %1326
        %v1329 = vsel %vm620, %v1325, 0
        %v1332 = vsel %vm638, %v1327, 0
        %1334 = vmatprep.subr.bf16.mxu0 0
        %1335 = vmatpush1.bf16.msra.mxu0 0
        %1336 = vmatprep.subr.bf16.mxu0 0
        %1337 = vmatpush1.bf16.msra.mxu0 0
        %1338 = vmatprep.subr.bf16.mxu0 0
        %1339 = vmatpush1.bf16.msra.mxu0 0
        %1340 = vmatprep.subr.bf16.mxu0 0
        %1341 = vmatpush1.bf16.msra.mxu0 0
        %1342 = vmatprep.subr.bf16.mxu0 0
        %1343 = vmatpush1.bf16.msra.mxu0 0
        %1344 = vmatprep.subr.bf16.mxu0 0
        %1345 = vmatpush1.bf16.msra.mxu0 0
        %1346 = vmatprep.subr.bf16.mxu0 0
        %1347 = vmatpush1.bf16.msra.mxu0 0
        %1348 = vmatprep.subr.bf16.mxu0 0
        %1349 = vmatpush1.bf16.msra.mxu0 %v1332
        %1350 = vmatprep.subr.bf16.mxu0 0
        %1351 = vmatpush2.bf16.msra.mxu0 0
        %1352 = vmatprep.subr.bf16.mxu0 0
        %1353 = vmatpush2.bf16.msra.mxu0 0
        %1354 = vmatprep.subr.bf16.mxu0 0
        %1355 = vmatpush2.bf16.msra.mxu0 0
        %1356 = vmatprep.subr.bf16.mxu0 0
        %1357 = vmatpush2.bf16.msra.mxu0 0
        %1358 = vmatprep.subr.bf16.mxu0 0
        %1359 = vmatpush2.bf16.msra.mxu0 0
        %1360 = vmatprep.subr.bf16.mxu0 0
        %1361 = vmatpush2.bf16.msra.mxu0 0
        %1362 = vmatprep.subr.bf16.mxu0 0
        %1363 = vmatpush2.bf16.msra.mxu0 0
        %1364 = vmatprep.subr.bf16.mxu0 0
        %1365 = vmatpush2.bf16.msra.mxu0 0
        %1366 = vmatprep.mubr.bf16.mxu0 0
        %1367 = vmatmul.mubr.bf16.gmra.mxu0 %v1329
        %v1368 = vpop.f32.mrf.mxu0
        %v1369 = vadd.f32 0.0, %v1368
        %v1370 = vpop.f32.mrf.mxu0
        %v1371 = vpop.f32.mrf.mxu0
        %v1372 = vpop.f32.mrf.mxu0
        %1373 = vdwg.mxu0
        %1375 = vrot.lane.b32.xlu0 %v1369, 24
        %v1376 = vpop.permute.xlu0 %1375
        %vm1378 = vcmask 228544
        %1379 = vst.msk [vmem:[#allocation2] sm:$0xff] %vm1378, %v1376
        %1380 = vrot.lane.b32.xlu0 %v568, 100
        %v1381 = vpop.permute.xlu0 %1380
        %1382 = vrot.lane.b32.xlu0 %v569, 68
        %v1383 = vpop.permute.xlu0 %1382
        %v1385 = vsel %vm573, %v1381, 0
        %v1388 = vsel %vm573, %v1383, 0
        %1390 = vmatprep.subr.bf16.mxu0 0
        %1391 = vmatpush1.bf16.xpose.msra.mxu0 0
        %1392 = vmatprep.subr.bf16.mxu0 0
        %1393 = vmatpush1.bf16.xpose.msra.mxu0 0
        %1394 = vmatprep.subr.bf16.mxu0 0
        %1395 = vmatpush1.bf16.xpose.msra.mxu0 0
        %1396 = vmatprep.subr.bf16.mxu0 0
        %1397 = vmatpush1.bf16.xpose.msra.mxu0 0
        %1398 = vmatprep.subr.bf16.mxu0 0
        %1399 = vmatpush1.bf16.xpose.msra.mxu0 0
        %1400 = vmatprep.subr.bf16.mxu0 0
        %1401 = vmatpush1.bf16.xpose.msra.mxu0 0
        %1402 = vmatprep.subr.bf16.mxu0 0
        %1403 = vmatpush1.bf16.xpose.msra.mxu0 0
        %1404 = vmatprep.subr.bf16.mxu0 0
        %1405 = vmatpush1.bf16.xpose.msra.mxu0 %v1388
        %1406 = vmatprep.subr.bf16.mxu0 0
        %1407 = vmatpush2.bf16.xpose.msra.mxu0 0
        %1408 = vmatprep.subr.bf16.mxu0 0
        %1409 = vmatpush2.bf16.xpose.msra.mxu0 0
        %1410 = vmatprep.subr.bf16.mxu0 0
        %1411 = vmatpush2.bf16.xpose.msra.mxu0 0
        %1412 = vmatprep.subr.bf16.mxu0 0
        %1413 = vmatpush2.bf16.xpose.msra.mxu0 0
        %1414 = vmatprep.subr.bf16.mxu0 0
        %1415 = vmatpush2.bf16.xpose.msra.mxu0 0
        %1416 = vmatprep.subr.bf16.mxu0 0
        %1417 = vmatpush2.bf16.xpose.msra.mxu0 0
        %1418 = vmatprep.subr.bf16.mxu0 0
        %1419 = vmatpush2.bf16.xpose.msra.mxu0 0
        %1420 = vmatprep.subr.bf16.mxu0 0
        %1421 = vmatpush2.bf16.xpose.msra.mxu0 0
        %1422 = vmatprep.mubr.bf16.mxu0 0
        %1423 = vmatmul.mubr.bf16.gmra.mxu0 %v1385
        %v1424 = vpop.f32.mrf.mxu0
        %v1425 = vadd.f32 0.0, %v1424
        %v1426 = vpop.f32.mrf.mxu0
        %v1427 = vpop.f32.mrf.mxu0
        %v1428 = vpop.f32.mrf.mxu0
        %1429 = vdwg.mxu0
        %v1430 = vsel %vm620, %v1425, -inf
        %1431 = vmax.xlane.f32.xlu0 %v1430
        %v1432 = vpop.xlane.xlu0 %1431
        %v1433 = vsub.f32 %v1425, %v1432
        %v1434 = vmul.f32 %v1433, 1.442695
        %v1435 = vpow.pop %v1434
        %v1436 = vsel %vm620, %v1435, 0.0
        %1437 = vadd.xlane.f32.xlu0 %v1436
        %v1438 = vpop.xlane.xlu0 %1437
        %v1439 = vrcp.pop %v1438
        %v1440 = vmul.f32 %v1435, %v1439
        %v1441 = vpack.c.bf16 %v1440, %v1440
        %1442 = vrot.lane.b32.xlu0 %v569, 36
        %v1443 = vpop.permute.xlu0 %1442
        %v1445 = vsel %vm620, %v1441, 0
        %v1448 = vsel %vm638, %v1443, 0
        %1450 = vmatprep.subr.bf16.mxu0 0
        %1451 = vmatpush1.bf16.msra.mxu0 0
        %1452 = vmatprep.subr.bf16.mxu0 0
        %1453 = vmatpush1.bf16.msra.mxu0 0
        %1454 = vmatprep.subr.bf16.mxu0 0
        %1455 = vmatpush1.bf16.msra.mxu0 0
        %1456 = vmatprep.subr.bf16.mxu0 0
        %1457 = vmatpush1.bf16.msra.mxu0 0
        %1458 = vmatprep.subr.bf16.mxu0 0
        %1459 = vmatpush1.bf16.msra.mxu0 0
        %1460 = vmatprep.subr.bf16.mxu0 0
        %1461 = vmatpush1.bf16.msra.mxu0 0
        %1462 = vmatprep.subr.bf16.mxu0 0
        %1463 = vmatpush1.bf16.msra.mxu0 0
        %1464 = vmatprep.subr.bf16.mxu0 0
        %1465 = vmatpush1.bf16.msra.mxu0 %v1448
        %1466 = vmatprep.subr.bf16.mxu0 0
        %1467 = vmatpush2.bf16.msra.mxu0 0
        %1468 = vmatprep.subr.bf16.mxu0 0
        %1469 = vmatpush2.bf16.msra.mxu0 0
        %1470 = vmatprep.subr.bf16.mxu0 0
        %1471 = vmatpush2.bf16.msra.mxu0 0
        %1472 = vmatprep.subr.bf16.mxu0 0
        %1473 = vmatpush2.bf16.msra.mxu0 0
        %1474 = vmatprep.subr.bf16.mxu0 0
        %1475 = vmatpush2.bf16.msra.mxu0 0
        %1476 = vmatprep.subr.bf16.mxu0 0
        %1477 = vmatpush2.bf16.msra.mxu0 0
        %1478 = vmatprep.subr.bf16.mxu0 0
        %1479 = vmatpush2.bf16.msra.mxu0 0
        %1480 = vmatprep.subr.bf16.mxu0 0
        %1481 = vmatpush2.bf16.msra.mxu0 0
        %1482 = vmatprep.mubr.bf16.mxu0 0
        %1483 = vmatmul.mubr.bf16.gmra.mxu0 %v1445
        %v1484 = vpop.f32.mrf.mxu0
        %v1485 = vadd.f32 0.0, %v1484
        %v1486 = vpop.f32.mrf.mxu0
        %v1487 = vpop.f32.mrf.mxu0
        %v1488 = vpop.f32.mrf.mxu0
        %1489 = vdwg.mxu0
        %1491 = vrot.lane.b32.xlu0 %v1485, 28
        %v1492 = vpop.permute.xlu0 %1491
        %vm1494 = vcmask 261344
        %1495 = vst.msk [vmem:[#allocation2] sm:$0xff] %vm1494, %v1492
        %v1496 = vld [vmem:[#allocation2] sm:$0xff]
        %v1497 = vpack.c.bf16 %v1496, %v1496
        %v1498 = vld [vmem:[%s4] sm:$0xf]
        %v1499 = vld [vmem:[%s4 + $0x4] sm:$0xf]
        %v1500 = vld [vmem:[%s4 + $0x8] sm:$0xf]
        %v1501 = vld [vmem:[%s4 + $0xc] sm:$0xf]
        %v1502 = vld [vmem:[#allocation3] sm:$0x1]
        %v1504 = vlaneseq
        %v1505 = vshrl.u32 %v1504, 7
        %v1506 = vsub.s32 0, %v1505
        %v1507 = vrot.slane %v1502, %v1506
        %v1513 = vunpack.c.l.b16 %v1498
        %v1514 = vunpack.c.l.b16 %v1499
        %v1515 = vunpack.c.l.b16 %v1500
        %v1516 = vunpack.c.l.b16 %v1501
        %v1517 = vpack.c.b16 %v1514, %v1513
        %v1518 = vpack.c.b16 %v1516, %v1515
        %v1522 = vsel %vm476, %v1497, 0
        %1524 = vmatprep.subr.bf16.mxu0 0
        %1525 = vmatpush1.bf16.msra.mxu0 0
        %1526 = vmatprep.subr.bf16.mxu0 0
        %1527 = vmatpush1.bf16.msra.mxu0 0
        %1528 = vmatprep.subr.bf16.mxu0 0
        %1529 = vmatpush1.bf16.msra.mxu0 0
        %1530 = vmatprep.subr.bf16.mxu0 0
        %1531 = vmatpush1.bf16.msra.mxu0 0
        %1532 = vmatprep.subr.bf16.mxu0 0
        %1533 = vmatpush1.bf16.msra.mxu0 0
        %1534 = vmatprep.subr.bf16.mxu0 0
        %1535 = vmatpush1.bf16.msra.mxu0 0
        %1536 = vmatprep.subr.bf16.mxu0 0
        %1537 = vmatpush1.bf16.msra.mxu0 %v1518
        %1538 = vmatprep.subr.bf16.mxu0 0
        %1539 = vmatpush1.bf16.msra.mxu0 %v1517
        %1540 = vmatprep.subr.bf16.mxu0 0
        %1541 = vmatpush2.bf16.msra.mxu0 0
        %1542 = vmatprep.subr.bf16.mxu0 0
        %1543 = vmatpush2.bf16.msra.mxu0 0
        %1544 = vmatprep.subr.bf16.mxu0 0
        %1545 = vmatpush2.bf16.msra.mxu0 0
        %1546 = vmatprep.subr.bf16.mxu0 0
        %1547 = vmatpush2.bf16.msra.mxu0 0
        %1548 = vmatprep.subr.bf16.mxu0 0
        %1549 = vmatpush2.bf16.msra.mxu0 0
        %1550 = vmatprep.subr.bf16.mxu0 0
        %1551 = vmatpush2.bf16.msra.mxu0 0
        %1552 = vmatprep.subr.bf16.mxu0 0
        %1553 = vmatpush2.bf16.msra.mxu0 0
        %1554 = vmatprep.subr.bf16.mxu0 0
        %1555 = vmatpush2.bf16.msra.mxu0 0
        %1556 = vmatprep.mubr.bf16.mxu0 0
        %1557 = vmatmul.mubr.bf16.gmra.mxu0 %v1522
        %v1558 = vpop.f32.mrf.mxu0
        %v1559 = vadd.f32 %v1507, %v1558
        %v1560 = vpop.f32.mrf.mxu0
        %v1561 = vpop.f32.mrf.mxu0
        %v1562 = vpop.f32.mrf.mxu0
        %1563 = vdwg.mxu0
        %v1564 = vadd.f32 %v475, %v1559
        %v1565 = vsel %vm476, %v1564, 0.0
        %1566 = vadd.xlane.f32.xlu0 %v1565
        %v1567 = vpop.xlane.xlu0 %1566
        %v1568 = vmul.f32 %v1567, %v480
        %v1569 = vsub.f32 %v1564, %v1568
        %v1570 = vmul.f32 %v1569, %v1569
        %v1571 = vsel %vm476, %v1570, 0.0
        %1572 = vadd.xlane.f32.xlu0 %v1571
        %v1573 = vpop.xlane.xlu0 %1572
        %v1574 = vmul.f32 %v1573, %v480
        %v1575 = vadd.f32 %v1574, 1e-05
        %v1576 = vrsqrt.pop %v1575
        %v1577 = vmul.f32 %v1569, %v1576
        %v1578 = vld [vmem:[#allocation6] sm:$0x1]
        %v1580 = vlaneseq
        %v1581 = vshrl.u32 %v1580, 7
        %v1582 = vsub.s32 0, %v1581
        %v1583 = vrot.slane %v1578, %v1582
        %v1585 = vmul.f32 %v1577, %v1583
        %v1586 = vld [vmem:[#allocation8] sm:$0x1]
        %v1588 = vlaneseq
        %v1589 = vshrl.u32 %v1588, 7
        %v1590 = vsub.s32 0, %v1589
        %v1591 = vrot.slane %v1586, %v1590
        %v1593 = vadd.f32 %v1585, %v1591
        %v1594 = vpack.c.bf16 %v1593, %v1593
        %v1595 = vld [vmem:[#allocation9] sm:$0xf]
        %v1596 = vld [vmem:[#allocation9 + $0x4] sm:$0xf]
        %v1597 = vld [vmem:[#allocation9 + $0x8] sm:$0xf]
        %v1598 = vld [vmem:[#allocation9 + $0xc] sm:$0xf]
        %v1599 = vld [vmem:[#allocation11] sm:$0x1]
        %v1601 = vlaneseq
        %v1602 = vshrl.u32 %v1601, 7
        %v1603 = vsub.s32 0, %v1602
        %v1604 = vrot.slane %v1599, %v1603
        %v1610 = vunpack.c.l.b16 %v1595
        %v1611 = vunpack.c.l.b16 %v1596
        %v1612 = vunpack.c.l.b16 %v1597
        %v1613 = vunpack.c.l.b16 %v1598
        %v1614 = vpack.c.b16 %v1611, %v1610
        %v1615 = vpack.c.b16 %v1613, %v1612
        %v1619 = vsel %vm476, %v1594, 0
        %1621 = vmatprep.subr.bf16.mxu0 0
        %1622 = vmatpush1.bf16.msra.mxu0 0
        %1623 = vmatprep.subr.bf16.mxu0 0
        %1624 = vmatpush1.bf16.msra.mxu0 0
        %1625 = vmatprep.subr.bf16.mxu0 0
        %1626 = vmatpush1.bf16.msra.mxu0 0
        %1627 = vmatprep.subr.bf16.mxu0 0
        %1628 = vmatpush1.bf16.msra.mxu0 0
        %1629 = vmatprep.subr.bf16.mxu0 0
        %1630 = vmatpush1.bf16.msra.mxu0 0
        %1631 = vmatprep.subr.bf16.mxu0 0
        %1632 = vmatpush1.bf16.msra.mxu0 0
        %1633 = vmatprep.subr.bf16.mxu0 0
        %1634 = vmatpush1.bf16.msra.mxu0 %v1615
        %1635 = vmatprep.subr.bf16.mxu0 0
        %1636 = vmatpush1.bf16.msra.mxu0 %v1614
        %1637 = vmatprep.subr.bf16.mxu0 0
        %1638 = vmatpush2.bf16.msra.mxu0 0
        %1639 = vmatprep.subr.bf16.mxu0 0
        %1640 = vmatpush2.bf16.msra.mxu0 0
        %1641 = vmatprep.subr.bf16.mxu0 0
        %1642 = vmatpush2.bf16.msra.mxu0 0
        %1643 = vmatprep.subr.bf16.mxu0 0
        %1644 = vmatpush2.bf16.msra.mxu0 0
        %1645 = vmatprep.subr.bf16.mxu0 0
        %1646 = vmatpush2.bf16.msra.mxu0 0
        %1647 = vmatprep.subr.bf16.mxu0 0
        %1648 = vmatpush2.bf16.msra.mxu0 0
        %1649 = vmatprep.subr.bf16.mxu0 0
        %1650 = vmatpush2.bf16.msra.mxu0 0
        %1651 = vmatprep.subr.bf16.mxu0 0
        %1652 = vmatpush2.bf16.msra.mxu0 0
        %1653 = vmatprep.mubr.bf16.mxu0 0
        %1654 = vmatmul.mubr.bf16.gmra.mxu0 %v1619
        %v1655 = vpop.f32.mrf.mxu0
        %v1656 = vadd.f32 %v1604, %v1655
        %v1657 = vpop.f32.mrf.mxu0
        %v1658 = vpop.f32.mrf.mxu0
        %v1659 = vpop.f32.mrf.mxu0
        %1660 = vdwg.mxu0
        %v1661 = vmul.f32 %v1656, 0.5
        %v1662 = vmul.f32 %v1656, 0.70710677
        %v1663 = verf.f32.pop %v1662
        %v1664 = vadd.f32 %v1663, 1.0
        %v1665 = vmul.f32 %v1661, %v1664
        %v1666 = vpack.c.bf16 %v1665, %v1665
        %v1667 = vld [vmem:[%s10] sm:$0xf]
        %v1668 = vld [vmem:[%s10 + $0x4] sm:$0xf]
        %v1669 = vld [vmem:[%s10 + $0x8] sm:$0xf]
        %v1670 = vld [vmem:[%s10 + $0xc] sm:$0xf]
        %v1671 = vld [vmem:[%s10 + $0x10] sm:$0xf]
        %v1672 = vld [vmem:[%s10 + $0x14] sm:$0xf]
        %v1673 = vld [vmem:[%s10 + $0x18] sm:$0xf]
        %v1674 = vld [vmem:[%s10 + $0x1c] sm:$0xf]
        %v1675 = vld [vmem:[%s11] sm:$0x1]
        %v1677 = vlaneseq
        %v1678 = vshrl.u32 %v1677, 7
        %v1679 = vsub.s32 0, %v1678
        %v1680 = vrot.slane %v1675, %v1679
        %v1690 = vunpack.c.l.b16 %v1667
        %v1691 = vunpack.c.l.b16 %v1668
        %v1692 = vunpack.c.l.b16 %v1669
        %v1693 = vunpack.c.l.b16 %v1670
        %v1694 = vunpack.c.l.b16 %v1671
        %v1695 = vunpack.c.l.b16 %v1672
        %v1696 = vunpack.c.l.b16 %v1673
        %v1697 = vunpack.c.l.b16 %v1674
        %v1698 = vpack.c.b16 %v1691, %v1690
        %v1699 = vpack.c.b16 %v1693, %v1692
        %v1700 = vpack.c.b16 %v1695, %v1694
        %v1701 = vpack.c.b16 %v1697, %v1696
        %vm1706 = vcmask 523264
        %v1708 = vsel %vm1706, %v1666, 0
        %1710 = vmatprep.subr.bf16.mxu0 0
        %1711 = vmatpush1.bf16.msra.mxu0 0
        %1712 = vmatprep.subr.bf16.mxu0 0
        %1713 = vmatpush1.bf16.msra.mxu0 0
        %1714 = vmatprep.subr.bf16.mxu0 0
        %1715 = vmatpush1.bf16.msra.mxu0 0
        %1716 = vmatprep.subr.bf16.mxu0 0
        %1717 = vmatpush1.bf16.msra.mxu0 0
        %1718 = vmatprep.subr.bf16.mxu0 0
        %1719 = vmatpush1.bf16.msra.mxu0 %v1701
        %1720 = vmatprep.subr.bf16.mxu0 0
        %1721 = vmatpush1.bf16.msra.mxu0 %v1700
        %1722 = vmatprep.subr.bf16.mxu0 0
        %1723 = vmatpush1.bf16.msra.mxu0 %v1699
        %1724 = vmatprep.subr.bf16.mxu0 0
        %1725 = vmatpush1.bf16.msra.mxu0 %v1698
        %1726 = vmatprep.subr.bf16.mxu0 0
        %1727 = vmatpush2.bf16.msra.mxu0 0
        %1728 = vmatprep.subr.bf16.mxu0 0
        %1729 = vmatpush2.bf16.msra.mxu0 0
        %1730 = vmatprep.subr.bf16.mxu0 0
        %1731 = vmatpush2.bf16.msra.mxu0 0
        %1732 = vmatprep.subr.bf16.mxu0 0
        %1733 = vmatpush2.bf16.msra.mxu0 0
        %1734 = vmatprep.subr.bf16.mxu0 0
        %1735 = vmatpush2.bf16.msra.mxu0 0
        %1736 = vmatprep.subr.bf16.mxu0 0
        %1737 = vmatpush2.bf16.msra.mxu0 0
        %1738 = vmatprep.subr.bf16.mxu0 0
        %1739 = vmatpush2.bf16.msra.mxu0 0
        %1740 = vmatprep.subr.bf16.mxu0 0
        %1741 = vmatpush2.bf16.msra.mxu0 0
        %1742 = vmatprep.mubr.bf16.mxu0 0
        %1743 = vmatmul.mubr.bf16.gmra.mxu0 %v1708
        %v1744 = vpop.f32.mrf.mxu0
        %v1745 = vadd.f32 %v1680, %v1744
        %v1746 = vpop.f32.mrf.mxu0
        %v1747 = vpop.f32.mrf.mxu0
        %v1748 = vpop.f32.mrf.mxu0
        %1749 = vdwg.mxu0
        %v1750 = vadd.f32 %v1564, %v1745
        %1751 = vst.msk [vmem:[%s469] sm:$0xff] %vm476, %v1750
        %s1752 = sand.u32 %s294, 1
        %s1753 = scalar_lea.sflag [#allocation5], %s1752
        %s1754 = sand.u32 %s294, 1
        %s1755 = smul.addr %s1754, 8
        %s1756 = scalar_lea.vmem [#allocation12], %s1755
        // Predicated region
        $region89: #{tpu_custom_call.1} parent=67 // pred_check
          %p1757 = pneg %p304
        $region90: #{tpu_custom_call.1} parent=67 // pred_check_branch
          %1759 = sbr.rel (%p1757) target = $region92
        $region91: #{tpu_custom_call.1} parent=67 // pred_region
          %s1761 = ssub.s32 128, 128
          %1762 = vsyncadd %s1753, %s1761
          %s1763 = smul.addr %s29, 128
          %s1764 = scalar_lea.hbm %s12, %s1763
          %s1766 = sshll.u32 %s1756, 4
          %s1767 = int_to_ptr.vmem [resolvable:$true] %s1766
          %1769 = dma.vmem_to_hbm [thread:$0]  %s1767, 128, %s1764, %s1753
        $region92: #{tpu_custom_call.1} parent=67 // pred_fallthru
          _
      $region68: #{tpu_custom_call.1} parent=5 // pred_fallthru
        _
      %p1770 = scmp.le.s32.totalorder 2, %s24
      // Predicated region
      $region93: #{tpu_custom_call.1} parent=5 // pred_check
        %p1771 = pneg %p1770
      $region94: #{tpu_custom_call.1} parent=5 // pred_check_branch
        %1773 = sbr.rel (%p1771) target = $region96
      $region95: #{tpu_custom_call.1} parent=5 // pred_region
        %s1774 = ssub.s32 %s24, 2
        // Predicated region
        $region97: #{tpu_custom_call.1} parent=95 // pred_check
          %p1775 = pneg %p310
        $region98: #{tpu_custom_call.1} parent=95 // pred_check_branch
          %1777 = sbr.rel (%p1775) target = $region100
        $region99: #{tpu_custom_call.1} parent=95 // pred_region
          %s1778 = sand.u32 %s295, 1
          %s1779 = scalar_lea.sflag [#allocation5], %s1778
          %s1780 = sand.u32 %s295, 1
          %s1781 = smul.addr %s1780, 8
          %s1782 = scalar_lea.vmem [#allocation12], %s1781
          %1783 = dma.done %s1779, 128
        $region100: #{tpu_custom_call.1} parent=95 // pred_fallthru
          _
      $region96: #{tpu_custom_call.1} parent=5 // pred_fallthru
        _
    $region6: #{tpu_custom_call.1} parent=1 // loop_footer
      %s28 = sadd.s32 1, %s24
    $region7: #{tpu_custom_call.1} parent=1 // loop_footer_branch
      %23 = sbr.rel target = $region3
    $region8: #{tpu_custom_call.1} parent=1 // loop_exit
      _
    %1784 = vsyncpa [#allocation4], 1
    %s1785 = scalar_lea.sflag [#allocation4], 1
    %1786 = vsyncpa %s1785, 1
    %1787 = vsyncpa [#allocation7], 1
    %1788 = vsyncpa [#allocation10], 1
    %1789 = vsyncpa [#allocation5], 1
    %s1790 = scalar_lea.sflag [#allocation5], 1
    %1791 = vsyncpa %s1790, 1

</llo_original>
